<compile_context>
chip_gen: v7x
topology: tpu7x:2x2x1
jax: 0.10.0
libtpu: 0.0.40
codegen_flags: <defaults>
</compile_context>

<pallas_src>
import jax
import jax.numpy as jnp
from jax.experimental import pallas as pl
from jax.experimental.pallas import tpu as pltpu

# ---- static config (mirrors the PyTorch `config` dict) ---------------------
BATCH       = 2
SEQ         = 16
HIDDEN      = 32                      # bert_config.dim
D_A         = 16                      # config['d_a']
R           = 4                       # config['r']  (attention hops)
NUM_CLASSES = 3                       # config['num_classes']
CAPS_PROP   = 8                       # config['caps_prop']
OUT_CAPS    = NUM_CLASSES * CAPS_PROP
NUM_ITERS   = 3                       # config['num_iters']


def _capsule_kernel(x_ref, ws1_ref, ws2_ref, capsw_ref,
                    attn_ref, logit_ref, pred_ref, routes_ref):
    x = x_ref[...]                                        # [B, S, H]
    ws1 = ws1_ref[...]                                    # [H, D_A]
    ws2 = ws2_ref[...]                                    # [D_A, R]
    capsw = capsw_ref[...]                                # [R, NC, CP, H]

    # ---- structured self-attention: whole batch in one matmul pair ---------
    x2 = x.reshape(BATCH * SEQ, HIDDEN)                   # [B*S, H]
    pre = jnp.tanh(jnp.dot(x2, ws1, preferred_element_type=jnp.float32))
    scores = jnp.dot(pre, ws2, preferred_element_type=jnp.float32)    # [B*S, R]
    scores = jnp.transpose(scores.reshape(BATCH, SEQ, R), (0, 2, 1))  # [B, R, S]
    m = jnp.max(scores, axis=-1, keepdims=True)
    e = jnp.exp(scores - m)
    attn = e * pl.reciprocal(jnp.sum(e, axis=-1, keepdims=True), approx=True)
    attn_ref[...] = attn                                  # [B, R, S]

    # ---- semantic vectors: one batched contraction over S ------------------
    sem = jnp.einsum('brs,bsh->brh', attn, x,
                     preferred_element_type=jnp.float32)  # [B, R, H]

    # ---- capsule prediction vectors: VPU broadcast-reduce over H -----------
    # pred4[b, r, n, p] = sum_h sem[b, r, h] * capsw[r, n, p, h]
    pred4 = jnp.sum(sem[:, :, None, None, :] * capsw[None, :, :, :, :],
                    axis=-1)                              # [B, R, NC, CP]
    pred_ref[...] = pred4

    # ---- dynamic routing, vectorized over (B, R, NC, CP) -------------------
    route_logits = jnp.zeros((BATCH, R, NUM_CLASSES), jnp.float32)
    routes = None
    v = None
    for _ in range(NUM_ITERS):
        bm = jnp.max(route_logits, axis=-1, keepdims=True)
        eb = jnp.exp(route_logits - bm)
        routes = eb * pl.reciprocal(jnp.sum(eb, axis=-1, keepdims=True),
                                    approx=True)          # [B, R, NC]
        preact = jnp.sum(routes[..., None] * pred4, axis=1)        # [B, NC, CP]
        nsq = jnp.sum(preact * preact, axis=-1, keepdims=True)     # [B, NC, 1]
        nrm = jnp.sqrt(nsq)
        # squash: preact / nrm * (nsq / (0.5 + nsq)) == preact * nrm / (0.5+nsq)
        v = preact * nrm * pl.reciprocal(0.5 + nsq, approx=True)   # [B, NC, CP]
        dist = jnp.sum(pred4 * v[:, None, :, :], axis=-1)          # [B, R, NC]
        route_logits = route_logits + dist

    routes_ref[...] = routes                              # [B, R, NC]
    logit_ref[...] = jnp.sqrt(jnp.sum(v * v, axis=-1))    # [B, NC]


@jax.jit
def capsule_forward(encoder_out, ws1, ws2, caps_w):
    B, S, H = encoder_out.shape
    # Layout plumbing outside the kernel (free): [R, H, NC*CP] -> [R, NC, CP, H]
    capsw_t = jnp.transpose(
        caps_w.reshape(R, H, NUM_CLASSES, CAPS_PROP), (0, 2, 3, 1))

    vmem = pl.BlockSpec(memory_space=pltpu.MemorySpace.VMEM)
    attention, logits, prediction, routes = pl.pallas_call(
        _capsule_kernel,
        out_shape=(
            jax.ShapeDtypeStruct((B, R, S), jnp.float32),
            jax.ShapeDtypeStruct((B, NUM_CLASSES), jnp.float32),
            jax.ShapeDtypeStruct((B, R, NUM_CLASSES, CAPS_PROP), jnp.float32),
            jax.ShapeDtypeStruct((B, R, NUM_CLASSES), jnp.float32),
        ),
        in_specs=[vmem, vmem, vmem, vmem],
        out_specs=(vmem, vmem, vmem, vmem),
    )(encoder_out, ws1, ws2, capsw_t)
    return attention, logits, prediction, routes


def reference_forward(output, ws1, ws2, caps_w):
    """Pure-JAX replica of the PyTorch forward (post-encoder), for checking."""
    B, S, H = output.shape
    comp = output.reshape(-1, H)
    pre = jnp.tanh(comp @ ws1)
    att = (pre @ ws2).reshape(B, S, R)
    att = jax.nn.softmax(jnp.transpose(att, (0, 2, 1)), axis=-1)      # [B, R, S]
    sem = jnp.einsum('brs,bsh->brh', att, output)                     # [B, R, H]
    pred = jnp.sum(sem[..., None] * caps_w[None], axis=2)             # [B, R, O]
    pred4 = pred.reshape(B, R, NUM_CLASSES, CAPS_PROP)
    b = jnp.zeros((B, R, NUM_CLASSES), jnp.float32)
    routes = v = None
    for _ in range(NUM_ITERS):
        routes = jax.nn.softmax(b, axis=2)
        preact = jnp.sum(routes[..., None] * pred4, axis=1)           # [B, NC, CP]
        norm = jnp.sqrt(jnp.sum(preact * preact, axis=-1, keepdims=True))
        nsq = norm * norm
        v = preact / norm * (nsq / (0.5 + nsq))
        dist = jnp.sum(pred4 * v[:, None], axis=-1)
        b = b + dist
    logits = jnp.sqrt(jnp.sum(v * v, axis=-1))                        # [B, NC]
    return att, logits, pred4, routes


if __name__ == "__main__":
    key = jax.random.PRNGKey(0)
    k1, k2, k3, k4 = jax.random.split(key, 4)

    # stand-in encoder hidden states ([0] output of the BERT encoder)
    encoder_out = jax.random.normal(k1, (BATCH, SEQ, HIDDEN), jnp.float32)

    # deterministic xavier_uniform_ init (same shapes as the nn.Module params)
    def xavier(k, shape, fan_in, fan_out):
        bound = (6.0 / (fan_in + fan_out)) ** 0.5
        return jax.random.uniform(k, shape, jnp.float32, -bound, bound)

    ws1 = xavier(k2, (HIDDEN, D_A), HIDDEN, D_A)          # == ws1.weight.T
    ws2 = xavier(k3, (D_A, R), D_A, R)                    # == ws2.weight.T
    caps_w = xavier(k4, (R, HIDDEN, OUT_CAPS),
                    HIDDEN * OUT_CAPS, R * OUT_CAPS)      # capsule_weights

    outs = capsule_forward(encoder_out, ws1, ws2, caps_w)
    outs = jax.block_until_ready(outs)

    refs = reference_forward(encoder_out, ws1, ws2, caps_w)
    for got, want in zip(outs, refs):
        assert got.shape == want.shape, (got.shape, want.shape)
        assert jnp.allclose(got, want, rtol=2e-2, atol=2e-2)

    print("KERNEL_OK")
</pallas_src>

<mosaic_0001>
module attributes {stable_mosaic.version = 11 : i64} {
  func.func @_capsule_kernel(%arg0: memref<2x16x32xf32, #tpu.memory_space<vmem>>, %arg1: memref<32x16xf32, #tpu.memory_space<vmem>>, %arg2: memref<16x4xf32, #tpu.memory_space<vmem>>, %arg3: memref<4x3x8x32xf32, #tpu.memory_space<vmem>>, %arg4: memref<2x4x16xf32, #tpu.memory_space<vmem>>, %arg5: memref<2x3xf32, #tpu.memory_space<vmem>>, %arg6: memref<2x4x3x8xf32, #tpu.memory_space<vmem>>, %arg7: memref<2x4x3xf32, #tpu.memory_space<vmem>>) attributes {dimension_semantics = [], scalar_prefetch = 0 : i64, scratch_operands = 0 : i64, tpu.core_type = #tpu.core_type<tc>} {
    %c0 = arith.constant 0 : index
    %c0_0 = arith.constant 0 : index
    %c0_1 = arith.constant 0 : index
    %0 = vector.load %arg0[%c0, %c0_0, %c0_1] : memref<2x16x32xf32, #tpu.memory_space<vmem>>, vector<2x16x32xf32>
    %c0_2 = arith.constant 0 : index
    %c0_3 = arith.constant 0 : index
    %1 = vector.load %arg1[%c0_2, %c0_3] : memref<32x16xf32, #tpu.memory_space<vmem>>, vector<32x16xf32>
    %c0_4 = arith.constant 0 : index
    %c0_5 = arith.constant 0 : index
    %2 = vector.load %arg2[%c0_4, %c0_5] : memref<16x4xf32, #tpu.memory_space<vmem>>, vector<16x4xf32>
    %c0_6 = arith.constant 0 : index
    %c0_7 = arith.constant 0 : index
    %c0_8 = arith.constant 0 : index
    %c0_9 = arith.constant 0 : index
    %3 = vector.load %arg3[%c0_6, %c0_7, %c0_8, %c0_9] : memref<4x3x8x32xf32, #tpu.memory_space<vmem>>, vector<4x3x8x32xf32>
    %4 = vector.shape_cast %0 : vector<2x16x32xf32> to vector<32x32xf32>
    %cst = arith.constant dense<0.000000e+00> : vector<32x16xf32>
    %5 = tpu.matmul %4, %1, %cst {dimension_numbers = #tpu.dot_dimension_numbers<[1], [0], [0], [1], [0, 0, 1, 1], [], []>} : vector<32x32xf32>, vector<32x16xf32>, vector<32x16xf32> -> vector<32x16xf32>
    %6 = math.tanh %5 : vector<32x16xf32>
    %cst_10 = arith.constant dense<0.000000e+00> : vector<32x4xf32>
    %7 = tpu.matmul %6, %2, %cst_10 {dimension_numbers = #tpu.dot_dimension_numbers<[1], [0], [0], [1], [0, 0, 1, 1], [], []>} : vector<32x16xf32>, vector<16x4xf32>, vector<32x4xf32> -> vector<32x4xf32>
    %8 = vector.shape_cast %7 : vector<32x4xf32> to vector<2x16x4xf32>
    %9 = tpu.transpose %8, [0, 2, 1] : vector<2x16x4xf32> -> vector<2x4x16xf32>
    %cst_11 = arith.constant dense<0xFF800000> : vector<2x4xf32>
    %10 = vector.multi_reduction <maximumf>, %9, %cst_11 [2] : vector<2x4x16xf32> to vector<2x4xf32>
    %11 = vector.shape_cast %10 : vector<2x4xf32> to vector<2x4x1xf32>
    %12 = vector.broadcast %11 : vector<2x4x1xf32> to vector<2x4x16xf32>
    %13 = arith.subf %9, %12 : vector<2x4x16xf32>
    %14 = math.exp %13 : vector<2x4x16xf32>
    %cst_12 = arith.constant dense<0.000000e+00> : vector<2x4xf32>
    %15 = vector.multi_reduction <add>, %14, %cst_12 [2] : vector<2x4x16xf32> to vector<2x4xf32>
    %16 = vector.shape_cast %15 : vector<2x4xf32> to vector<2x4x1xf32>
    %17 = tpu.reciprocal %16 {approx = true} : vector<2x4x1xf32> -> vector<2x4x1xf32>
    %18 = vector.broadcast %17 : vector<2x4x1xf32> to vector<2x4x16xf32>
    %19 = arith.mulf %14, %18 : vector<2x4x16xf32>
    %c0_13 = arith.constant 0 : index
    %c0_14 = arith.constant 0 : index
    %c0_15 = arith.constant 0 : index
    %20 = vector.load %arg4[%c0_13, %c0_14, %c0_15] : memref<2x4x16xf32, #tpu.memory_space<vmem>>, vector<2x4x16xf32>
    tpu.vector_store %arg4[%c0_13, %c0_14, %c0_15], %19 {strides = array<i32>} : memref<2x4x16xf32, #tpu.memory_space<vmem>>, vector<2x4x16xf32>,
    "tpu.trace_start"() <{level = 10 : i32, message = "brs,bsh->brh"}> : () -> ()
    %cst_16 = arith.constant dense<0.000000e+00> : vector<2x4x32xf32>
    %21 = tpu.matmul %19, %0, %cst_16 {dimension_numbers = #tpu.dot_dimension_numbers<[2], [1], [1], [2], [0, 0, 0, 1, 1, 2], [0], [0]>} : vector<2x4x16xf32>, vector<2x16x32xf32>, vector<2x4x32xf32> -> vector<2x4x32xf32>
    "tpu.trace_stop"() : () -> ()
    %22 = vector.shape_cast %21 : vector<2x4x32xf32> to vector<2x4x1x1x32xf32>
    %23 = vector.shape_cast %3 : vector<4x3x8x32xf32> to vector<1x4x3x8x32xf32>
    %24 = vector.broadcast %22 : vector<2x4x1x1x32xf32> to vector<2x4x3x8x32xf32>
    %25 = vector.broadcast %23 : vector<1x4x3x8x32xf32> to vector<2x4x3x8x32xf32>
    %26 = arith.mulf %24, %25 : vector<2x4x3x8x32xf32>
    %cst_17 = arith.constant dense<0.000000e+00> : vector<2x4x3x8xf32>
    %27 = vector.multi_reduction <add>, %26, %cst_17 [4] : vector<2x4x3x8x32xf32> to vector<2x4x3x8xf32>
    %c0_18 = arith.constant 0 : index
    %c0_19 = arith.constant 0 : index
    %c0_20 = arith.constant 0 : index
    %c0_21 = arith.constant 0 : index
    %28 = vector.load %arg6[%c0_18, %c0_19, %c0_20, %c0_21] : memref<2x4x3x8xf32, #tpu.memory_space<vmem>>, vector<2x4x3x8xf32>
    tpu.vector_store %arg6[%c0_18, %c0_19, %c0_20, %c0_21], %27 {strides = array<i32>} : memref<2x4x3x8xf32, #tpu.memory_space<vmem>>, vector<2x4x3x8xf32>,
    %cst_22 = arith.constant 0.000000e+00 : f32
    %29 = vector.broadcast %cst_22 : f32 to vector<2x4x3xf32>
    %cst_23 = arith.constant dense<0xFF800000> : vector<2x4xf32>
    %30 = vector.multi_reduction <maximumf>, %29, %cst_23 [2] : vector<2x4x3xf32> to vector<2x4xf32>
    %31 = vector.shape_cast %30 : vector<2x4xf32> to vector<2x4x1xf32>
    %32 = vector.broadcast %31 : vector<2x4x1xf32> to vector<2x4x3xf32>
    %33 = arith.subf %29, %32 : vector<2x4x3xf32>
    %34 = math.exp %33 : vector<2x4x3xf32>
    %cst_24 = arith.constant dense<0.000000e+00> : vector<2x4xf32>
    %35 = vector.multi_reduction <add>, %34, %cst_24 [2] : vector<2x4x3xf32> to vector<2x4xf32>
    %36 = vector.shape_cast %35 : vector<2x4xf32> to vector<2x4x1xf32>
    %37 = tpu.reciprocal %36 {approx = true} : vector<2x4x1xf32> -> vector<2x4x1xf32>
    %38 = vector.broadcast %37 : vector<2x4x1xf32> to vector<2x4x3xf32>
    %39 = arith.mulf %34, %38 : vector<2x4x3xf32>
    %40 = vector.shape_cast %39 : vector<2x4x3xf32> to vector<2x4x3x1xf32>
    %41 = vector.broadcast %40 : vector<2x4x3x1xf32> to vector<2x4x3x8xf32>
    %42 = arith.mulf %41, %27 : vector<2x4x3x8xf32>
    %cst_25 = arith.constant dense<0.000000e+00> : vector<2x3x8xf32>
    %43 = vector.multi_reduction <add>, %42, %cst_25 [1] : vector<2x4x3x8xf32> to vector<2x3x8xf32>
    %44 = arith.mulf %43, %43 : vector<2x3x8xf32>
    %cst_26 = arith.constant dense<0.000000e+00> : vector<2x3xf32>
    %45 = vector.multi_reduction <add>, %44, %cst_26 [2] : vector<2x3x8xf32> to vector<2x3xf32>
    %46 = vector.shape_cast %45 : vector<2x3xf32> to vector<2x3x1xf32>
    %47 = math.sqrt %46 : vector<2x3x1xf32>
    %48 = vector.broadcast %47 : vector<2x3x1xf32> to vector<2x3x8xf32>
    %49 = arith.mulf %43, %48 : vector<2x3x8xf32>
    %cst_27 = arith.constant 5.000000e-01 : f32
    %50 = vector.broadcast %cst_27 : f32 to vector<2x3x1xf32>
    %51 = arith.addf %50, %46 : vector<2x3x1xf32>
    %52 = tpu.reciprocal %51 {approx = true} : vector<2x3x1xf32> -> vector<2x3x1xf32>
    %53 = vector.broadcast %52 : vector<2x3x1xf32> to vector<2x3x8xf32>
    %54 = arith.mulf %49, %53 : vector<2x3x8xf32>
    %55 = vector.shape_cast %54 : vector<2x3x8xf32> to vector<2x1x3x8xf32>
    %56 = vector.broadcast %55 : vector<2x1x3x8xf32> to vector<2x4x3x8xf32>
    %57 = arith.mulf %27, %56 : vector<2x4x3x8xf32>
    %cst_28 = arith.constant dense<0.000000e+00> : vector<2x4x3xf32>
    %58 = vector.multi_reduction <add>, %57, %cst_28 [3] : vector<2x4x3x8xf32> to vector<2x4x3xf32>
    %59 = arith.addf %29, %58 : vector<2x4x3xf32>
    %cst_29 = arith.constant dense<0xFF800000> : vector<2x4xf32>
    %60 = vector.multi_reduction <maximumf>, %59, %cst_29 [2] : vector<2x4x3xf32> to vector<2x4xf32>
    %61 = vector.shape_cast %60 : vector<2x4xf32> to vector<2x4x1xf32>
    %62 = vector.broadcast %61 : vector<2x4x1xf32> to vector<2x4x3xf32>
    %63 = arith.subf %59, %62 : vector<2x4x3xf32>
    %64 = math.exp %63 : vector<2x4x3xf32>
    %cst_30 = arith.constant dense<0.000000e+00> : vector<2x4xf32>
    %65 = vector.multi_reduction <add>, %64, %cst_30 [2] : vector<2x4x3xf32> to vector<2x4xf32>
    %66 = vector.shape_cast %65 : vector<2x4xf32> to vector<2x4x1xf32>
    %67 = tpu.reciprocal %66 {approx = true} : vector<2x4x1xf32> -> vector<2x4x1xf32>
    %68 = vector.broadcast %67 : vector<2x4x1xf32> to vector<2x4x3xf32>
    %69 = arith.mulf %64, %68 : vector<2x4x3xf32>
    %70 = vector.shape_cast %69 : vector<2x4x3xf32> to vector<2x4x3x1xf32>
    %71 = vector.broadcast %70 : vector<2x4x3x1xf32> to vector<2x4x3x8xf32>
    %72 = arith.mulf %71, %27 : vector<2x4x3x8xf32>
    %cst_31 = arith.constant dense<0.000000e+00> : vector<2x3x8xf32>
    %73 = vector.multi_reduction <add>, %72, %cst_31 [1] : vector<2x4x3x8xf32> to vector<2x3x8xf32>
    %74 = arith.mulf %73, %73 : vector<2x3x8xf32>
    %cst_32 = arith.constant dense<0.000000e+00> : vector<2x3xf32>
    %75 = vector.multi_reduction <add>, %74, %cst_32 [2] : vector<2x3x8xf32> to vector<2x3xf32>
    %76 = vector.shape_cast %75 : vector<2x3xf32> to vector<2x3x1xf32>
    %77 = math.sqrt %76 : vector<2x3x1xf32>
    %78 = vector.broadcast %77 : vector<2x3x1xf32> to vector<2x3x8xf32>
    %79 = arith.mulf %73, %78 : vector<2x3x8xf32>
    %cst_33 = arith.constant 5.000000e-01 : f32
    %80 = vector.broadcast %cst_33 : f32 to vector<2x3x1xf32>
    %81 = arith.addf %80, %76 : vector<2x3x1xf32>
    %82 = tpu.reciprocal %81 {approx = true} : vector<2x3x1xf32> -> vector<2x3x1xf32>
    %83 = vector.broadcast %82 : vector<2x3x1xf32> to vector<2x3x8xf32>
    %84 = arith.mulf %79, %83 : vector<2x3x8xf32>
    %85 = vector.shape_cast %84 : vector<2x3x8xf32> to vector<2x1x3x8xf32>
    %86 = vector.broadcast %85 : vector<2x1x3x8xf32> to vector<2x4x3x8xf32>
    %87 = arith.mulf %27, %86 : vector<2x4x3x8xf32>
    %cst_34 = arith.constant dense<0.000000e+00> : vector<2x4x3xf32>
    %88 = vector.multi_reduction <add>, %87, %cst_34 [3] : vector<2x4x3x8xf32> to vector<2x4x3xf32>
    %89 = arith.addf %59, %88 : vector<2x4x3xf32>
    %cst_35 = arith.constant dense<0xFF800000> : vector<2x4xf32>
    %90 = vector.multi_reduction <maximumf>, %89, %cst_35 [2] : vector<2x4x3xf32> to vector<2x4xf32>
    %91 = vector.shape_cast %90 : vector<2x4xf32> to vector<2x4x1xf32>
    %92 = vector.broadcast %91 : vector<2x4x1xf32> to vector<2x4x3xf32>
    %93 = arith.subf %89, %92 : vector<2x4x3xf32>
    %94 = math.exp %93 : vector<2x4x3xf32>
    %cst_36 = arith.constant dense<0.000000e+00> : vector<2x4xf32>
    %95 = vector.multi_reduction <add>, %94, %cst_36 [2] : vector<2x4x3xf32> to vector<2x4xf32>
    %96 = vector.shape_cast %95 : vector<2x4xf32> to vector<2x4x1xf32>
    %97 = tpu.reciprocal %96 {approx = true} : vector<2x4x1xf32> -> vector<2x4x1xf32>
    %98 = vector.broadcast %97 : vector<2x4x1xf32> to vector<2x4x3xf32>
    %99 = arith.mulf %94, %98 : vector<2x4x3xf32>
    %100 = vector.shape_cast %99 : vector<2x4x3xf32> to vector<2x4x3x1xf32>
    %101 = vector.broadcast %100 : vector<2x4x3x1xf32> to vector<2x4x3x8xf32>
    %102 = arith.mulf %101, %27 : vector<2x4x3x8xf32>
    %cst_37 = arith.constant dense<0.000000e+00> : vector<2x3x8xf32>
    %103 = vector.multi_reduction <add>, %102, %cst_37 [1] : vector<2x4x3x8xf32> to vector<2x3x8xf32>
    %104 = arith.mulf %103, %103 : vector<2x3x8xf32>
    %cst_38 = arith.constant dense<0.000000e+00> : vector<2x3xf32>
    %105 = vector.multi_reduction <add>, %104, %cst_38 [2] : vector<2x3x8xf32> to vector<2x3xf32>
    %106 = vector.shape_cast %105 : vector<2x3xf32> to vector<2x3x1xf32>
    %107 = math.sqrt %106 : vector<2x3x1xf32>
    %108 = vector.broadcast %107 : vector<2x3x1xf32> to vector<2x3x8xf32>
    %109 = arith.mulf %103, %108 : vector<2x3x8xf32>
    %cst_39 = arith.constant 5.000000e-01 : f32
    %110 = vector.broadcast %cst_39 : f32 to vector<2x3x1xf32>
    %111 = arith.addf %110, %106 : vector<2x3x1xf32>
    %112 = tpu.reciprocal %111 {approx = true} : vector<2x3x1xf32> -> vector<2x3x1xf32>
    %113 = vector.broadcast %112 : vector<2x3x1xf32> to vector<2x3x8xf32>
    %114 = arith.mulf %109, %113 : vector<2x3x8xf32>
    %c0_40 = arith.constant 0 : index
    %c0_41 = arith.constant 0 : index
    %c0_42 = arith.constant 0 : index
    %115 = vector.load %arg7[%c0_40, %c0_41, %c0_42] : memref<2x4x3xf32, #tpu.memory_space<vmem>>, vector<2x4x3xf32>
    tpu.vector_store %arg7[%c0_40, %c0_41, %c0_42], %99 {strides = array<i32>} : memref<2x4x3xf32, #tpu.memory_space<vmem>>, vector<2x4x3xf32>,
    %116 = arith.mulf %114, %114 : vector<2x3x8xf32>
    %cst_43 = arith.constant dense<0.000000e+00> : vector<2x3xf32>
    %117 = vector.multi_reduction <add>, %116, %cst_43 [2] : vector<2x3x8xf32> to vector<2x3xf32>
    %118 = math.sqrt %117 : vector<2x3xf32>
    %c0_44 = arith.constant 0 : index
    %c0_45 = arith.constant 0 : index
    %119 = vector.load %arg5[%c0_44, %c0_45] : memref<2x3xf32, #tpu.memory_space<vmem>>, vector<2x3xf32>
    tpu.vector_store %arg5[%c0_44, %c0_45], %118 {strides = array<i32>} : memref<2x3xf32, #tpu.memory_space<vmem>>, vector<2x3xf32>,
    return
  }
}

</mosaic_0001>

<llo_original>
// kernel: capsule_forward.1
$region0: #{capsule_forward.1}
  #allocation0 [shape = 'u32[]', space=smem, size = 0x4, offset = 0x4, fixed_abs, tag = 'smem constant byte address 0x4 - core index']
  #allocation1 [shape = 'u32[144,128]{1,0:T(1,128)}', space=vmem, size = 0x12000, scoped, tag = 'internal scratch']
  %s0 = inlined_call_operand.vmem [shape: f32[2,16,32], index: 0, kind: input, shape index: {}]
  %s1 = inlined_call_operand.vmem [shape: f32[32,16], index: 1, kind: input, shape index: {}]
  %s2 = inlined_call_operand.vmem [shape: f32[16,4], index: 2, kind: input, shape index: {}]
  %s3 = inlined_call_operand.hbm [shape: f32[4,3,8,32], index: 3, kind: input, shape index: {}]
  %s4 = inlined_call_operand.hbm [shape: f32[2,4,16], index: 4, kind: output, shape index: {0}]
  %s5 = inlined_call_operand.hbm [shape: f32[2,3], index: 5, kind: output, shape index: {1}]
  %s6 = inlined_call_operand.vmem [shape: f32[2,4,3,8], index: 6, kind: output, shape index: {2}]
  %s7 = inlined_call_operand.vmem [shape: f32[2,4,3], index: 7, kind: output, shape index: {3}]
  %8 = xla_tuple %s4, %s5, %s6, %s7
  %s9 = sld [smem:[#allocation0]]
  $region54: #{capsule_forward.1} parent=0
    _
  %s11 = ssub.s32 1, %s9
  %s12 = scalar_select 0, %s11, %s9
  $region1: #{capsule_forward.1} parent=0
    #allocation2 [shape = 'u8[49152]{0}', space=vmem, size = 0xc000, scoped, tag = 'input window, operand 3, single buffered']
    #allocation3 [shape = 's32[1]{0}', space=sflag, size = 0x4, scoped, tag = 'scoped memory for capsule_forward.1']
    #allocation4 [shape = 's32[1]{0}', space=sflag, size = 0x4, scoped, tag = 'scoped memory for capsule_forward.1']
    #allocation5 [shape = 'u8[4096]{0}', space=vmem, size = 0x1000, scoped, tag = 'output window, operand 0, single buffered']
    #allocation6 [shape = 'u8[1024]{0}', space=vmem, size = 0x400, scoped, tag = 'output window, operand 1, single buffered']
    #allocation7 [shape = 's32[1]{0}', space=sflag, size = 0x4, scoped, tag = 'scoped memory for capsule_forward.1']
    %13 = vsyncpa [#allocation3], 0
    %14 = vsyncpa [#allocation4], 0
    %15 = vsyncpa [#allocation7], 0
    // Predicated region
    $region2: #{capsule_forward.1} parent=1 // pred_check
      _
    $region3: #{capsule_forward.1} parent=1 // pred_check_branch
      %17 = sbr.rel (0) target = $region5
    $region4: #{capsule_forward.1} parent=1 // pred_region
      _
    $region5: #{capsule_forward.1} parent=1 // pred_fallthru
      _
    // Predicated region
    $region6: #{capsule_forward.1} parent=1 // pred_check
      _
    $region7: #{capsule_forward.1} parent=1 // pred_check_branch
      %19 = sbr.rel (0) target = $region9
    $region8: #{capsule_forward.1} parent=1 // pred_region
      _
    $region9: #{capsule_forward.1} parent=1 // pred_fallthru
      _
    // Predicated region
    $region10: #{capsule_forward.1} parent=1 // pred_check
      _
    $region11: #{capsule_forward.1} parent=1 // pred_check_branch
      %21 = sbr.rel (0) target = $region13
    $region12: #{capsule_forward.1} parent=1 // pred_region
      _
    $region13: #{capsule_forward.1} parent=1 // pred_fallthru
      _
    // Predicated region
    $region14: #{capsule_forward.1} parent=1 // pred_check
      _
    $region15: #{capsule_forward.1} parent=1 // pred_check_branch
      %23 = sbr.rel (0) target = $region17
    $region16: #{capsule_forward.1} parent=1 // pred_region
      %s25 = ssub.s32 1536, 1536
      %26 = vsyncadd [#allocation3], %s25
      %s27 = sshll.u32 [#allocation2], 4
      %s28 = int_to_ptr.vmem [resolvable:$true] %s27
      %33 = dma.hbm_to_vmem [thread:$0]  %s3, 1536, %s28, [#allocation3], 128, 128, 8
    $region17: #{capsule_forward.1} parent=1 // pred_fallthru
      _
    // Predicated region
    $region18: #{capsule_forward.1} parent=1 // pred_check
      _
    $region19: #{capsule_forward.1} parent=1 // pred_check_branch
      %35 = sbr.rel (0) target = $region21
    $region20: #{capsule_forward.1} parent=1 // pred_region
      %36 = dma.done [#allocation3], 1536
    $region21: #{capsule_forward.1} parent=1 // pred_fallthru
      _
    %v37 = vld [vmem:[%s0] sm:$0xff]
    %v38 = vld [vmem:[%s0 + $0x8] sm:$0xff]
    %v39 = vld [vmem:[%s0 + $0x10] sm:$0xff]
    %v40 = vld [vmem:[%s0 + $0x18] sm:$0xff]
    %v41 = vld [vmem:[%s1] sm:$0xff]
    %v42 = vld [vmem:[%s1 + $0x8] sm:$0xff]
    %v43 = vld [vmem:[%s1 + $0x10] sm:$0xff]
    %v44 = vld [vmem:[%s1 + $0x18] sm:$0xff]
    %v45 = vld [vmem:[%s2] sm:$0xff]
    %v46 = vld [vmem:[%s2 + $0x8] sm:$0xff]
    %v47 = vld [vmem:[#allocation2] sm:$0xff]
    %v48 = vld [vmem:[#allocation2 + $0x8] sm:$0xff]
    %v49 = vld [vmem:[#allocation2 + $0x10] sm:$0xff]
    %v50 = vld [vmem:[#allocation2 + $0x18] sm:$0xff]
    %v51 = vld [vmem:[#allocation2 + $0x20] sm:$0xff]
    %v52 = vld [vmem:[#allocation2 + $0x28] sm:$0xff]
    %v53 = vld [vmem:[#allocation2 + $0x30] sm:$0xff]
    %v54 = vld [vmem:[#allocation2 + $0x38] sm:$0xff]
    %v55 = vld [vmem:[#allocation2 + $0x40] sm:$0xff]
    %v56 = vld [vmem:[#allocation2 + $0x48] sm:$0xff]
    %v57 = vld [vmem:[#allocation2 + $0x50] sm:$0xff]
    %v58 = vld [vmem:[#allocation2 + $0x58] sm:$0xff]
    %vm59 = vcmask 261120
    %v61 = vsel %vm59, %v37, 0
    %v64 = vsel %vm59, %v38, 0
    %v67 = vsel %vm59, %v39, 0
    %v70 = vsel %vm59, %v40, 0
    %72 = vmatprep.subr.mxu0 0.0
    %73 = vmatpush1.msra.mxu0 %v41
    %74 = vmatprep.subr.mxu0 0.0
    %75 = vmatpush1.msra.mxu0 %v42
    %76 = vmatprep.subr.mxu0 0.0
    %77 = vmatpush1.msra.mxu0 %v43
    %78 = vmatprep.subr.mxu0 0.0
    %79 = vmatpush1.msra.mxu0 %v44
    %80 = vmatprep.subr.mxu0 0.0
    %81 = vmatpush1.msra.mxu0 0.0
    %82 = vmatprep.subr.mxu0 0.0
    %83 = vmatpush1.msra.mxu0 0.0
    %84 = vmatprep.subr.mxu0 0.0
    %85 = vmatpush1.msra.mxu0 0.0
    %86 = vmatprep.subr.mxu0 0.0
    %87 = vmatpush1.msra.mxu0 0.0
    %88 = vmatprep.subr.mxu0 0.0
    %89 = vmatpush1.msra.mxu0 0.0
    %90 = vmatprep.subr.mxu0 0.0
    %91 = vmatpush1.msra.mxu0 0.0
    %92 = vmatprep.subr.mxu0 0.0
    %93 = vmatpush1.msra.mxu0 0.0
    %94 = vmatprep.subr.mxu0 0.0
    %95 = vmatpush1.msra.mxu0 0.0
    %96 = vmatprep.subr.mxu0 0.0
    %97 = vmatpush1.msra.mxu0 0.0
    %98 = vmatprep.subr.mxu0 0.0
    %99 = vmatpush1.msra.mxu0 0.0
    %100 = vmatprep.subr.mxu0 0.0
    %101 = vmatpush1.msra.mxu0 0.0
    %102 = vmatprep.subr.mxu0 0.0
    %103 = vmatpush1.msra.mxu0 0.0
    %104 = vmatprep.subr.mxu0 0.0
    %105 = vmatpush1.msra.mxu0 0.0
    %106 = vmatprep.subr.mxu0 0.0
    %107 = vmatpush1.msra.mxu0 0.0
    %108 = vmatprep.subr.mxu0 0.0
    %109 = vmatpush1.msra.mxu0 0.0
    %110 = vmatprep.subr.mxu0 0.0
    %111 = vmatpush1.msra.mxu0 0.0
    %112 = vmatprep.subr.mxu0 0.0
    %113 = vmatpush1.msra.mxu0 0.0
    %114 = vmatprep.subr.mxu0 0.0
    %115 = vmatpush1.msra.mxu0 0.0
    %116 = vmatprep.subr.mxu0 0.0
    %117 = vmatpush1.msra.mxu0 0.0
    %118 = vmatprep.subr.mxu0 0.0
    %119 = vmatpush1.msra.mxu0 0.0
    %120 = vmatprep.subr.mxu0 0.0
    %121 = vmatpush1.msra.mxu0 0.0
    %122 = vmatprep.subr.mxu0 0.0
    %123 = vmatpush1.msra.mxu0 0.0
    %124 = vmatprep.subr.mxu0 0.0
    %125 = vmatpush1.msra.mxu0 0.0
    %126 = vmatprep.subr.mxu0 0.0
    %127 = vmatpush1.msra.mxu0 0.0
    %128 = vmatprep.subr.mxu0 0.0
    %129 = vmatpush1.msra.mxu0 0.0
    %130 = vmatprep.subr.mxu0 0.0
    %131 = vmatpush1.msra.mxu0 0.0
    %132 = vmatprep.subr.mxu0 0.0
    %133 = vmatpush1.msra.mxu0 0.0
    %134 = vmatprep.subr.mxu0 0.0
    %135 = vmatpush1.msra.mxu0 0.0
    %136 = vmatprep.mubr.f32.mxu0 0.0
    %137 = vmatmul.mubr.f32.gmra.mrb[0].mxu0 %v61
    %v138 = vpop.f32.mrb[0].mxu0
    %v139 = vadd.f32 0.0, %v138
    %v140 = vpop.f32.mrb[0].mxu0
    %141 = vmatprep.mubr.f32.mxu0 0.0
    %142 = vmatmul.mubr.f32.gmra.mrb[0].mxu0 %v64
    %v143 = vpop.f32.mrb[0].mxu0
    %v144 = vadd.f32 0.0, %v143
    %v145 = vpop.f32.mrb[0].mxu0
    %146 = vmatprep.mubr.f32.mxu0 0.0
    %147 = vmatmul.mubr.f32.gmra.mrb[0].mxu0 %v67
    %v148 = vpop.f32.mrb[0].mxu0
    %v149 = vadd.f32 0.0, %v148
    %v150 = vpop.f32.mrb[0].mxu0
    %151 = vmatprep.mubr.f32.mxu0 0.0
    %152 = vmatmul.mubr.f32.gmra.mrb[0].mxu0 %v70
    %v153 = vpop.f32.mrb[0].mxu0
    %v154 = vadd.f32 0.0, %v153
    %v155 = vpop.f32.mrb[0].mxu0
    %156 = vdwg.mxu0
    %v157 = vtanh.pop %v139
    %v158 = vtanh.pop %v144
    %v159 = vtanh.pop %v149
    %v160 = vtanh.pop %v154
    %vm161 = vcmask 130048
    %v163 = vsel %vm161, %v157, 0
    %v166 = vsel %vm161, %v158, 0
    %v169 = vsel %vm161, %v159, 0
    %v172 = vsel %vm161, %v160, 0
    %174 = vmatprep.subr.mxu0 0.0
    %175 = vmatpush1.msra.mxu0 %v45
    %176 = vmatprep.subr.mxu0 0.0
    %177 = vmatpush1.msra.mxu0 %v46
    %178 = vmatprep.subr.mxu0 0.0
    %179 = vmatpush1.msra.mxu0 0.0
    %180 = vmatprep.subr.mxu0 0.0
    %181 = vmatpush1.msra.mxu0 0.0
    %182 = vmatprep.subr.mxu0 0.0
    %183 = vmatpush1.msra.mxu0 0.0
    %184 = vmatprep.subr.mxu0 0.0
    %185 = vmatpush1.msra.mxu0 0.0
    %186 = vmatprep.subr.mxu0 0.0
    %187 = vmatpush1.msra.mxu0 0.0
    %188 = vmatprep.subr.mxu0 0.0
    %189 = vmatpush1.msra.mxu0 0.0
    %190 = vmatprep.subr.mxu0 0.0
    %191 = vmatpush1.msra.mxu0 0.0
    %192 = vmatprep.subr.mxu0 0.0
    %193 = vmatpush1.msra.mxu0 0.0
    %194 = vmatprep.subr.mxu0 0.0
    %195 = vmatpush1.msra.mxu0 0.0
    %196 = vmatprep.subr.mxu0 0.0
    %197 = vmatpush1.msra.mxu0 0.0
    %198 = vmatprep.subr.mxu0 0.0
    %199 = vmatpush1.msra.mxu0 0.0
    %200 = vmatprep.subr.mxu0 0.0
    %201 = vmatpush1.msra.mxu0 0.0
    %202 = vmatprep.subr.mxu0 0.0
    %203 = vmatpush1.msra.mxu0 0.0
    %204 = vmatprep.subr.mxu0 0.0
    %205 = vmatpush1.msra.mxu0 0.0
    %206 = vmatprep.subr.mxu0 0.0
    %207 = vmatpush1.msra.mxu0 0.0
    %208 = vmatprep.subr.mxu0 0.0
    %209 = vmatpush1.msra.mxu0 0.0
    %210 = vmatprep.subr.mxu0 0.0
    %211 = vmatpush1.msra.mxu0 0.0
    %212 = vmatprep.subr.mxu0 0.0
    %213 = vmatpush1.msra.mxu0 0.0
    %214 = vmatprep.subr.mxu0 0.0
    %215 = vmatpush1.msra.mxu0 0.0
    %216 = vmatprep.subr.mxu0 0.0
    %217 = vmatpush1.msra.mxu0 0.0
    %218 = vmatprep.subr.mxu0 0.0
    %219 = vmatpush1.msra.mxu0 0.0
    %220 = vmatprep.subr.mxu0 0.0
    %221 = vmatpush1.msra.mxu0 0.0
    %222 = vmatprep.subr.mxu0 0.0
    %223 = vmatpush1.msra.mxu0 0.0
    %224 = vmatprep.subr.mxu0 0.0
    %225 = vmatpush1.msra.mxu0 0.0
    %226 = vmatprep.subr.mxu0 0.0
    %227 = vmatpush1.msra.mxu0 0.0
    %228 = vmatprep.subr.mxu0 0.0
    %229 = vmatpush1.msra.mxu0 0.0
    %230 = vmatprep.subr.mxu0 0.0
    %231 = vmatpush1.msra.mxu0 0.0
    %232 = vmatprep.subr.mxu0 0.0
    %233 = vmatpush1.msra.mxu0 0.0
    %234 = vmatprep.subr.mxu0 0.0
    %235 = vmatpush1.msra.mxu0 0.0
    %236 = vmatprep.subr.mxu0 0.0
    %237 = vmatpush1.msra.mxu0 0.0
    %238 = vmatprep.mubr.f32.mxu0 0.0
    %239 = vmatmul.mubr.f32.gmra.mrb[0].mxu0 %v163
    %v240 = vpop.f32.mrb[0].mxu0
    %v241 = vadd.f32 0.0, %v240
    %v242 = vpop.f32.mrb[0].mxu0
    %243 = vmatprep.mubr.f32.mxu0 0.0
    %244 = vmatmul.mubr.f32.gmra.mrb[0].mxu0 %v166
    %v245 = vpop.f32.mrb[0].mxu0
    %v246 = vadd.f32 0.0, %v245
    %v247 = vpop.f32.mrb[0].mxu0
    %248 = vmatprep.mubr.f32.mxu0 0.0
    %249 = vmatmul.mubr.f32.gmra.mrb[0].mxu0 %v169
    %v250 = vpop.f32.mrb[0].mxu0
    %v251 = vadd.f32 0.0, %v250
    %v252 = vpop.f32.mrb[0].mxu0
    %253 = vmatprep.mubr.f32.mxu0 0.0
    %254 = vmatmul.mubr.f32.gmra.mrb[0].mxu0 %v172
    %v255 = vpop.f32.mrb[0].mxu0
    %v256 = vadd.f32 0.0, %v255
    %v257 = vpop.f32.mrb[0].mxu0
    %258 = vdwg.mxu0
    %259 = vxpose.xlu0.b32.start [1/16] %v241, 128
    %260 = vxpose.xlu0.b32.cont [2/16] %v246, 128
    %261 = vxpose.xlu0.b32.cont [3/16] 0.0, 128
    %262 = vxpose.xlu0.b32.cont [4/16] 0.0, 128
    %263 = vxpose.xlu0.b32.cont [5/16] 0.0, 128
    %264 = vxpose.xlu0.b32.cont [6/16] 0.0, 128
    %265 = vxpose.xlu0.b32.cont [7/16] 0.0, 128
    %266 = vxpose.xlu0.b32.cont [8/16] 0.0, 128
    %267 = vxpose.xlu0.b32.cont [9/16] 0.0, 128
    %268 = vxpose.xlu0.b32.cont [10/16] 0.0, 128
    %269 = vxpose.xlu0.b32.cont [11/16] 0.0, 128
    %270 = vxpose.xlu0.b32.cont [12/16] 0.0, 128
    %271 = vxpose.xlu0.b32.cont [13/16] 0.0, 128
    %272 = vxpose.xlu0.b32.cont [14/16] 0.0, 128
    %273 = vxpose.xlu0.b32.cont [15/16] 0.0, 128
    %274 = vxpose.xlu0.b32.end [16/16] 0.0, 128
    %v275 = vpop.trf.xlu0
    %v276 = vpop.trf.xlu0
    %v277 = vpop.trf.xlu0
    %v278 = vpop.trf.xlu0
    %v279 = vpop.trf.xlu0
    %v280 = vpop.trf.xlu0
    %v281 = vpop.trf.xlu0
    %v282 = vpop.trf.xlu0
    %v283 = vpop.trf.xlu0
    %v284 = vpop.trf.xlu0
    %v285 = vpop.trf.xlu0
    %v286 = vpop.trf.xlu0
    %v287 = vpop.trf.xlu0
    %v288 = vpop.trf.xlu0
    %v289 = vpop.trf.xlu0
    %v290 = vpop.trf.xlu0
    %291 = vxpose.xlu0.b32.start [1/16] %v251, 128
    %292 = vxpose.xlu0.b32.cont [2/16] %v256, 128
    %293 = vxpose.xlu0.b32.cont [3/16] 0.0, 128
    %294 = vxpose.xlu0.b32.cont [4/16] 0.0, 128
    %295 = vxpose.xlu0.b32.cont [5/16] 0.0, 128
    %296 = vxpose.xlu0.b32.cont [6/16] 0.0, 128
    %297 = vxpose.xlu0.b32.cont [7/16] 0.0, 128
    %298 = vxpose.xlu0.b32.cont [8/16] 0.0, 128
    %299 = vxpose.xlu0.b32.cont [9/16] 0.0, 128
    %300 = vxpose.xlu0.b32.cont [10/16] 0.0, 128
    %301 = vxpose.xlu0.b32.cont [11/16] 0.0, 128
    %302 = vxpose.xlu0.b32.cont [12/16] 0.0, 128
    %303 = vxpose.xlu0.b32.cont [13/16] 0.0, 128
    %304 = vxpose.xlu0.b32.cont [14/16] 0.0, 128
    %305 = vxpose.xlu0.b32.cont [15/16] 0.0, 128
    %306 = vxpose.xlu0.b32.end [16/16] 0.0, 128
    %v307 = vpop.trf.xlu0
    %v308 = vpop.trf.xlu0
    %v309 = vpop.trf.xlu0
    %v310 = vpop.trf.xlu0
    %v311 = vpop.trf.xlu0
    %v312 = vpop.trf.xlu0
    %v313 = vpop.trf.xlu0
    %v314 = vpop.trf.xlu0
    %v315 = vpop.trf.xlu0
    %v316 = vpop.trf.xlu0
    %v317 = vpop.trf.xlu0
    %v318 = vpop.trf.xlu0
    %v319 = vpop.trf.xlu0
    %v320 = vpop.trf.xlu0
    %v321 = vpop.trf.xlu0
    %v322 = vpop.trf.xlu0
    %vm323 = vcmask 125952
    %v324 = vsel %vm323, %v275, -inf
    %325 = vmax.xlane.f32.xlu0 %v324
    %v326 = vpop.xlane.xlu0 %325
    %v327 = vsel %vm323, %v307, -inf
    %328 = vmax.xlane.f32.xlu0 %v327
    %v329 = vpop.xlane.xlu0 %328
    %v330 = vsub.f32 %v275, %v326
    %v331 = vsub.f32 %v307, %v329
    %v332 = vmul.f32 %v330, 1.442695
    %v333 = vpow.pop %v332
    %v334 = vmul.f32 %v331, 1.442695
    %v335 = vpow.pop %v334
    %v336 = vsel %vm323, %v333, 0.0
    %337 = vadd.xlane.f32.xlu0 %v336
    %v338 = vpop.xlane.xlu0 %337
    %v339 = vsel %vm323, %v335, 0.0
    %340 = vadd.xlane.f32.xlu0 %v339
    %v341 = vpop.xlane.xlu0 %340
    %v342 = vrcp.pop %v338
    %v343 = vrcp.pop %v341
    %v344 = vmul.f32 %v333, %v342
    %v345 = vmul.f32 %v335, %v343
    %346 = vst.msk [vmem:[#allocation5] sm:$0xf] %vm323, %v344
    %347 = vst.msk [vmem:[#allocation5 + $0x4] sm:$0xf] %vm323, %v345
    %v349 = vsel %vm161, %v344, 0
    %351 = vmatprep.subr.mxu0 0.0
    %352 = vmatpush1.msra.mxu0 %v37
    %353 = vmatprep.subr.mxu0 0.0
    %354 = vmatpush1.msra.mxu0 %v38
    %355 = vmatprep.subr.mxu0 0.0
    %356 = vmatpush1.msra.mxu0 0.0
    %357 = vmatprep.subr.mxu0 0.0
    %358 = vmatpush1.msra.mxu0 0.0
    %359 = vmatprep.subr.mxu0 0.0
    %360 = vmatpush1.msra.mxu0 0.0
    %361 = vmatprep.subr.mxu0 0.0
    %362 = vmatpush1.msra.mxu0 0.0
    %363 = vmatprep.subr.mxu0 0.0
    %364 = vmatpush1.msra.mxu0 0.0
    %365 = vmatprep.subr.mxu0 0.0
    %366 = vmatpush1.msra.mxu0 0.0
    %367 = vmatprep.subr.mxu0 0.0
    %368 = vmatpush1.msra.mxu0 0.0
    %369 = vmatprep.subr.mxu0 0.0
    %370 = vmatpush1.msra.mxu0 0.0
    %371 = vmatprep.subr.mxu0 0.0
    %372 = vmatpush1.msra.mxu0 0.0
    %373 = vmatprep.subr.mxu0 0.0
    %374 = vmatpush1.msra.mxu0 0.0
    %375 = vmatprep.subr.mxu0 0.0
    %376 = vmatpush1.msra.mxu0 0.0
    %377 = vmatprep.subr.mxu0 0.0
    %378 = vmatpush1.msra.mxu0 0.0
    %379 = vmatprep.subr.mxu0 0.0
    %380 = vmatpush1.msra.mxu0 0.0
    %381 = vmatprep.subr.mxu0 0.0
    %382 = vmatpush1.msra.mxu0 0.0
    %383 = vmatprep.subr.mxu0 0.0
    %384 = vmatpush1.msra.mxu0 0.0
    %385 = vmatprep.subr.mxu0 0.0
    %386 = vmatpush1.msra.mxu0 0.0
    %387 = vmatprep.subr.mxu0 0.0
    %388 = vmatpush1.msra.mxu0 0.0
    %389 = vmatprep.subr.mxu0 0.0
    %390 = vmatpush1.msra.mxu0 0.0
    %391 = vmatprep.subr.mxu0 0.0
    %392 = vmatpush1.msra.mxu0 0.0
    %393 = vmatprep.subr.mxu0 0.0
    %394 = vmatpush1.msra.mxu0 0.0
    %395 = vmatprep.subr.mxu0 0.0
    %396 = vmatpush1.msra.mxu0 0.0
    %397 = vmatprep.subr.mxu0 0.0
    %398 = vmatpush1.msra.mxu0 0.0
    %399 = vmatprep.subr.mxu0 0.0
    %400 = vmatpush1.msra.mxu0 0.0
    %401 = vmatprep.subr.mxu0 0.0
    %402 = vmatpush1.msra.mxu0 0.0
    %403 = vmatprep.subr.mxu0 0.0
    %404 = vmatpush1.msra.mxu0 0.0
    %405 = vmatprep.subr.mxu0 0.0
    %406 = vmatpush1.msra.mxu0 0.0
    %407 = vmatprep.subr.mxu0 0.0
    %408 = vmatpush1.msra.mxu0 0.0
    %409 = vmatprep.subr.mxu0 0.0
    %410 = vmatpush1.msra.mxu0 0.0
    %411 = vmatprep.subr.mxu0 0.0
    %412 = vmatpush1.msra.mxu0 0.0
    %413 = vmatprep.subr.mxu0 0.0
    %414 = vmatpush1.msra.mxu0 0.0
    %415 = vmatprep.mubr.f32.mxu0 0.0
    %416 = vmatmul.mubr.f32.gmra.mrb[0].mxu0 %v349
    %v417 = vpop.f32.mrb[0].mxu0
    %v418 = vadd.f32 0.0, %v417
    %v419 = vpop.f32.mrb[0].mxu0
    %420 = vdwg.mxu0
    %v422 = vsel %vm161, %v345, 0
    %424 = vmatprep.subr.mxu0 0.0
    %425 = vmatpush1.msra.mxu0 %v39
    %426 = vmatprep.subr.mxu0 0.0
    %427 = vmatpush1.msra.mxu0 %v40
    %428 = vmatprep.subr.mxu0 0.0
    %429 = vmatpush1.msra.mxu0 0.0
    %430 = vmatprep.subr.mxu0 0.0
    %431 = vmatpush1.msra.mxu0 0.0
    %432 = vmatprep.subr.mxu0 0.0
    %433 = vmatpush1.msra.mxu0 0.0
    %434 = vmatprep.subr.mxu0 0.0
    %435 = vmatpush1.msra.mxu0 0.0
    %436 = vmatprep.subr.mxu0 0.0
    %437 = vmatpush1.msra.mxu0 0.0
    %438 = vmatprep.subr.mxu0 0.0
    %439 = vmatpush1.msra.mxu0 0.0
    %440 = vmatprep.subr.mxu0 0.0
    %441 = vmatpush1.msra.mxu0 0.0
    %442 = vmatprep.subr.mxu0 0.0
    %443 = vmatpush1.msra.mxu0 0.0
    %444 = vmatprep.subr.mxu0 0.0
    %445 = vmatpush1.msra.mxu0 0.0
    %446 = vmatprep.subr.mxu0 0.0
    %447 = vmatpush1.msra.mxu0 0.0
    %448 = vmatprep.subr.mxu0 0.0
    %449 = vmatpush1.msra.mxu0 0.0
    %450 = vmatprep.subr.mxu0 0.0
    %451 = vmatpush1.msra.mxu0 0.0
    %452 = vmatprep.subr.mxu0 0.0
    %453 = vmatpush1.msra.mxu0 0.0
    %454 = vmatprep.subr.mxu0 0.0
    %455 = vmatpush1.msra.mxu0 0.0
    %456 = vmatprep.subr.mxu0 0.0
    %457 = vmatpush1.msra.mxu0 0.0
    %458 = vmatprep.subr.mxu0 0.0
    %459 = vmatpush1.msra.mxu0 0.0
    %460 = vmatprep.subr.mxu0 0.0
    %461 = vmatpush1.msra.mxu0 0.0
    %462 = vmatprep.subr.mxu0 0.0
    %463 = vmatpush1.msra.mxu0 0.0
    %464 = vmatprep.subr.mxu0 0.0
    %465 = vmatpush1.msra.mxu0 0.0
    %466 = vmatprep.subr.mxu0 0.0
    %467 = vmatpush1.msra.mxu0 0.0
    %468 = vmatprep.subr.mxu0 0.0
    %469 = vmatpush1.msra.mxu0 0.0
    %470 = vmatprep.subr.mxu0 0.0
    %471 = vmatpush1.msra.mxu0 0.0
    %472 = vmatprep.subr.mxu0 0.0
    %473 = vmatpush1.msra.mxu0 0.0
    %474 = vmatprep.subr.mxu0 0.0
    %475 = vmatpush1.msra.mxu0 0.0
    %476 = vmatprep.subr.mxu0 0.0
    %477 = vmatpush1.msra.mxu0 0.0
    %478 = vmatprep.subr.mxu0 0.0
    %479 = vmatpush1.msra.mxu0 0.0
    %480 = vmatprep.subr.mxu0 0.0
    %481 = vmatpush1.msra.mxu0 0.0
    %482 = vmatprep.subr.mxu0 0.0
    %483 = vmatpush1.msra.mxu0 0.0
    %484 = vmatprep.subr.mxu0 0.0
    %485 = vmatpush1.msra.mxu0 0.0
    %486 = vmatprep.subr.mxu0 0.0
    %487 = vmatpush1.msra.mxu0 0.0
    %488 = vmatprep.mubr.f32.mxu0 0.0
    %489 = vmatmul.mubr.f32.gmra.mrb[0].mxu0 %v422
    %v490 = vpop.f32.mrb[0].mxu0
    %v491 = vadd.f32 0.0, %v490
    %v492 = vpop.f32.mrb[0].mxu0
    %493 = vdwg.mxu0
    %v497 = vunpack.c.l.s4 1966171168
    %v498 = vunpack.c.0.s8 %v497
    %v499 = vlaneseq
    %v500 = vshrl.u32 %v499, 7
    %v501 = vsub.s32 %v498, %v500
    %v502 = vrot.slane %v418, %v501
    %v503 = vcombine.high %v502, %v502
    %v505 = vunpack.c.l.s4 1966171168
    %v506 = vunpack.c.0.s8 %v505
    %v507 = vlaneseq
    %v508 = vshrl.u32 %v507, 7
    %v509 = vsub.s32 %v506, %v508
    %v510 = vrot.slane %v502, %v509
    %v512 = vunpack.c.l.s4 1966171168
    %v513 = vunpack.c.0.s8 %v512
    %v514 = vlaneseq
    %v515 = vshrl.u32 %v514, 7
    %v516 = vsub.s32 %v513, %v515
    %v517 = vrot.slane %v503, %v516
    %v518 = vcombine.high %v510, %v510
    %v519 = vcombine.high %v517, %v517
    %v521 = vunpack.c.l.s4 1966171168
    %v522 = vunpack.c.0.s8 %v521
    %v523 = vlaneseq
    %v524 = vshrl.u32 %v523, 7
    %v525 = vsub.s32 %v522, %v524
    %v526 = vrot.slane %v491, %v525
    %v527 = vcombine.high %v526, %v526
    %v529 = vunpack.c.l.s4 1966171168
    %v530 = vunpack.c.0.s8 %v529
    %v531 = vlaneseq
    %v532 = vshrl.u32 %v531, 7
    %v533 = vsub.s32 %v530, %v532
    %v534 = vrot.slane %v526, %v533
    %v536 = vunpack.c.l.s4 1966171168
    %v537 = vunpack.c.0.s8 %v536
    %v538 = vlaneseq
    %v539 = vshrl.u32 %v538, 7
    %v540 = vsub.s32 %v537, %v539
    %v541 = vrot.slane %v527, %v540
    %v542 = vcombine.high %v534, %v534
    %v543 = vcombine.high %v541, %v541
    %v544 = vlaneseq
    %v545 = vshrl.u32 %v544, 7
    %v546 = vsub.s32 0, %v545
    %v547 = vrot.slane %v510, %v546
    %v548 = vlaneseq
    %v549 = vshrl.u32 %v548, 7
    %v550 = vsub.s32 0, %v549
    %v551 = vrot.slane %v517, %v550
    %v552 = vlaneseq
    %v553 = vshrl.u32 %v552, 7
    %v554 = vsub.s32 0, %v553
    %v555 = vrot.slane %v518, %v554
    %v556 = vlaneseq
    %v557 = vshrl.u32 %v556, 7
    %v558 = vsub.s32 0, %v557
    %v559 = vrot.slane %v519, %v558
    %v560 = vlaneseq
    %v561 = vshrl.u32 %v560, 7
    %v562 = vsub.s32 0, %v561
    %v563 = vrot.slane %v534, %v562
    %v564 = vlaneseq
    %v565 = vshrl.u32 %v564, 7
    %v566 = vsub.s32 0, %v565
    %v567 = vrot.slane %v541, %v566
    %v568 = vlaneseq
    %v569 = vshrl.u32 %v568, 7
    %v570 = vsub.s32 0, %v569
    %v571 = vrot.slane %v542, %v570
    %v572 = vlaneseq
    %v573 = vshrl.u32 %v572, 7
    %v574 = vsub.s32 0, %v573
    %v575 = vrot.slane %v543, %v574
    %v584 = vmul.f32 %v547, %v47
    %v585 = vmul.f32 %v547, %v48
    %v586 = vmul.f32 %v547, %v49
    %v587 = vmul.f32 %v551, %v50
    %v588 = vmul.f32 %v551, %v51
    %v589 = vmul.f32 %v551, %v52
    %v590 = vmul.f32 %v555, %v53
    %v591 = vmul.f32 %v555, %v54
    %v592 = vmul.f32 %v555, %v55
    %v593 = vmul.f32 %v559, %v56
    %v594 = vmul.f32 %v559, %v57
    %v595 = vmul.f32 %v559, %v58
    %v596 = vmul.f32 %v563, %v47
    %v597 = vmul.f32 %v563, %v48
    %v598 = vmul.f32 %v563, %v49
    %v599 = vmul.f32 %v567, %v50
    %v600 = vmul.f32 %v567, %v51
    %v601 = vmul.f32 %v567, %v52
    %v602 = vmul.f32 %v571, %v53
    %v603 = vmul.f32 %v571, %v54
    %v604 = vmul.f32 %v571, %v55
    %v605 = vmul.f32 %v575, %v56
    %v606 = vmul.f32 %v575, %v57
    %v607 = vmul.f32 %v575, %v58
    %v608 = vsel %vm59, %v584, 0.0
    %609 = vadd.xlane.f32.xlu0 %v608
    %v610 = vpop.xlane.xlu0 %609
    %v611 = vsel %vm59, %v585, 0.0
    %612 = vadd.xlane.f32.xlu0 %v611
    %v613 = vpop.xlane.xlu0 %612
    %v614 = vsel %vm59, %v586, 0.0
    %615 = vadd.xlane.f32.xlu0 %v614
    %v616 = vpop.xlane.xlu0 %615
    %v617 = vsel %vm59, %v587, 0.0
    %618 = vadd.xlane.f32.xlu0 %v617
    %v619 = vpop.xlane.xlu0 %618
    %v620 = vsel %vm59, %v588, 0.0
    %621 = vadd.xlane.f32.xlu0 %v620
    %v622 = vpop.xlane.xlu0 %621
    %v623 = vsel %vm59, %v589, 0.0
    %624 = vadd.xlane.f32.xlu0 %v623
    %v625 = vpop.xlane.xlu0 %624
    %v626 = vsel %vm59, %v590, 0.0
    %627 = vadd.xlane.f32.xlu0 %v626
    %v628 = vpop.xlane.xlu0 %627
    %v629 = vsel %vm59, %v591, 0.0
    %630 = vadd.xlane.f32.xlu0 %v629
    %v631 = vpop.xlane.xlu0 %630
    %v632 = vsel %vm59, %v592, 0.0
    %633 = vadd.xlane.f32.xlu0 %v632
    %v634 = vpop.xlane.xlu0 %633
    %v635 = vsel %vm59, %v593, 0.0
    %636 = vadd.xlane.f32.xlu0 %v635
    %v637 = vpop.xlane.xlu0 %636
    %v638 = vsel %vm59, %v594, 0.0
    %639 = vadd.xlane.f32.xlu0 %v638
    %v640 = vpop.xlane.xlu0 %639
    %v641 = vsel %vm59, %v595, 0.0
    %642 = vadd.xlane.f32.xlu0 %v641
    %v643 = vpop.xlane.xlu0 %642
    %v644 = vsel %vm59, %v596, 0.0
    %645 = vadd.xlane.f32.xlu0 %v644
    %v646 = vpop.xlane.xlu0 %645
    %v647 = vsel %vm59, %v597, 0.0
    %648 = vadd.xlane.f32.xlu0 %v647
    %v649 = vpop.xlane.xlu0 %648
    %v650 = vsel %vm59, %v598, 0.0
    %651 = vadd.xlane.f32.xlu0 %v650
    %v652 = vpop.xlane.xlu0 %651
    %v653 = vsel %vm59, %v599, 0.0
    %654 = vadd.xlane.f32.xlu0 %v653
    %v655 = vpop.xlane.xlu0 %654
    %v656 = vsel %vm59, %v600, 0.0
    %657 = vadd.xlane.f32.xlu0 %v656
    %v658 = vpop.xlane.xlu0 %657
    %v659 = vsel %vm59, %v601, 0.0
    %660 = vadd.xlane.f32.xlu0 %v659
    %v661 = vpop.xlane.xlu0 %660
    %v662 = vsel %vm59, %v602, 0.0
    %663 = vadd.xlane.f32.xlu0 %v662
    %v664 = vpop.xlane.xlu0 %663
    %v665 = vsel %vm59, %v603, 0.0
    %666 = vadd.xlane.f32.xlu0 %v665
    %v667 = vpop.xlane.xlu0 %666
    %v668 = vsel %vm59, %v604, 0.0
    %669 = vadd.xlane.f32.xlu0 %v668
    %v670 = vpop.xlane.xlu0 %669
    %v671 = vsel %vm59, %v605, 0.0
    %672 = vadd.xlane.f32.xlu0 %v671
    %v673 = vpop.xlane.xlu0 %672
    %v674 = vsel %vm59, %v606, 0.0
    %675 = vadd.xlane.f32.xlu0 %v674
    %v676 = vpop.xlane.xlu0 %675
    %v677 = vsel %vm59, %v607, 0.0
    %678 = vadd.xlane.f32.xlu0 %v677
    %v679 = vpop.xlane.xlu0 %678
    %v704 = vlaneseq
    %v705 = vand.u32 %v704, 127
    %v706 = vlaneseq
    %v707 = vshrl.u32 %v706, 7
    %v708 = vsub.s32 %v705, %v707
    %v709 = vrot.slane %v610, %v708
    %v710 = vlaneseq
    %v711 = vshrl.u32 %v710, 7
    %v712 = vsub.s32 %v705, %v711
    %v713 = vrot.slane %v613, %v712
    %v714 = vlaneseq
    %v715 = vshrl.u32 %v714, 7
    %v716 = vsub.s32 %v705, %v715
    %v717 = vrot.slane %v616, %v716
    %v718 = vlaneseq
    %v719 = vshrl.u32 %v718, 7
    %v720 = vsub.s32 %v705, %v719
    %v721 = vrot.slane %v619, %v720
    %v722 = vlaneseq
    %v723 = vshrl.u32 %v722, 7
    %v724 = vsub.s32 %v705, %v723
    %v725 = vrot.slane %v622, %v724
    %v726 = vlaneseq
    %v727 = vshrl.u32 %v726, 7
    %v728 = vsub.s32 %v705, %v727
    %v729 = vrot.slane %v625, %v728
    %v730 = vlaneseq
    %v731 = vshrl.u32 %v730, 7
    %v732 = vsub.s32 %v705, %v731
    %v733 = vrot.slane %v628, %v732
    %v734 = vlaneseq
    %v735 = vshrl.u32 %v734, 7
    %v736 = vsub.s32 %v705, %v735
    %v737 = vrot.slane %v631, %v736
    %v738 = vlaneseq
    %v739 = vshrl.u32 %v738, 7
    %v740 = vsub.s32 %v705, %v739
    %v741 = vrot.slane %v634, %v740
    %v742 = vlaneseq
    %v743 = vshrl.u32 %v742, 7
    %v744 = vsub.s32 %v705, %v743
    %v745 = vrot.slane %v637, %v744
    %v746 = vlaneseq
    %v747 = vshrl.u32 %v746, 7
    %v748 = vsub.s32 %v705, %v747
    %v749 = vrot.slane %v640, %v748
    %v750 = vlaneseq
    %v751 = vshrl.u32 %v750, 7
    %v752 = vsub.s32 %v705, %v751
    %v753 = vrot.slane %v643, %v752
    %v754 = vlaneseq
    %v755 = vshrl.u32 %v754, 7
    %v756 = vsub.s32 %v705, %v755
    %v757 = vrot.slane %v646, %v756
    %v758 = vlaneseq
    %v759 = vshrl.u32 %v758, 7
    %v760 = vsub.s32 %v705, %v759
    %v761 = vrot.slane %v649, %v760
    %v762 = vlaneseq
    %v763 = vshrl.u32 %v762, 7
    %v764 = vsub.s32 %v705, %v763
    %v765 = vrot.slane %v652, %v764
    %v766 = vlaneseq
    %v767 = vshrl.u32 %v766, 7
    %v768 = vsub.s32 %v705, %v767
    %v769 = vrot.slane %v655, %v768
    %v770 = vlaneseq
    %v771 = vshrl.u32 %v770, 7
    %v772 = vsub.s32 %v705, %v771
    %v773 = vrot.slane %v658, %v772
    %v774 = vlaneseq
    %v775 = vshrl.u32 %v774, 7
    %v776 = vsub.s32 %v705, %v775
    %v777 = vrot.slane %v661, %v776
    %v778 = vlaneseq
    %v779 = vshrl.u32 %v778, 7
    %v780 = vsub.s32 %v705, %v779
    %v781 = vrot.slane %v664, %v780
    %v782 = vlaneseq
    %v783 = vshrl.u32 %v782, 7
    %v784 = vsub.s32 %v705, %v783
    %v785 = vrot.slane %v667, %v784
    %v786 = vlaneseq
    %v787 = vshrl.u32 %v786, 7
    %v788 = vsub.s32 %v705, %v787
    %v789 = vrot.slane %v670, %v788
    %v790 = vlaneseq
    %v791 = vshrl.u32 %v790, 7
    %v792 = vsub.s32 %v705, %v791
    %v793 = vrot.slane %v673, %v792
    %v794 = vlaneseq
    %v795 = vshrl.u32 %v794, 7
    %v796 = vsub.s32 %v705, %v795
    %v797 = vrot.slane %v676, %v796
    %v798 = vlaneseq
    %v799 = vshrl.u32 %v798, 7
    %v800 = vsub.s32 %v705, %v799
    %v801 = vrot.slane %v679, %v800
    %vm802 = vcmask 1041409
    %v803 = vsel %vm802, %v713, %v709
    %vm804 = vcmask 1042434
    %v805 = vsel %vm804, %v717, %v803
    %v806 = vsel %vm802, %v725, %v721
    %v807 = vsel %vm804, %v729, %v806
    %v808 = vsel %vm802, %v737, %v733
    %v809 = vsel %vm804, %v741, %v808
    %v810 = vsel %vm802, %v749, %v745
    %v811 = vsel %vm804, %v753, %v810
    %v812 = vsel %vm802, %v761, %v757
    %v813 = vsel %vm804, %v765, %v812
    %v814 = vsel %vm802, %v773, %v769
    %v815 = vsel %vm804, %v777, %v814
    %v816 = vsel %vm802, %v785, %v781
    %v817 = vsel %vm804, %v789, %v816
    %v818 = vsel %vm802, %v797, %v793
    %v819 = vsel %vm804, %v801, %v818
    %vm828 = vcmask 59392
    %829 = vst.msk [vmem:[%s6] sm:$0x7] %vm828, %v805
    %830 = vst.msk [vmem:[%s6 + $0x4] sm:$0x7] %vm828, %v807
    %831 = vst.msk [vmem:[%s6 + $0x8] sm:$0x7] %vm828, %v809
    %832 = vst.msk [vmem:[%s6 + $0xc] sm:$0x7] %vm828, %v811
    %833 = vst.msk [vmem:[%s6 + $0x10] sm:$0x7] %vm828, %v813
    %834 = vst.msk [vmem:[%s6 + $0x14] sm:$0x7] %vm828, %v815
    %835 = vst.msk [vmem:[%s6 + $0x18] sm:$0x7] %vm828, %v817
    %836 = vst.msk [vmem:[%s6 + $0x1c] sm:$0x7] %vm828, %v819
    %vm837 = vcmask 23552
    %v838 = vsel %vm837, 1.0, 0.0
    %839 = vadd.xlane.f32.xlu0 %v838
    %v840 = vpop.xlane.xlu0 %839
    %v841 = vrcp.pop %v840
    %v842 = vmul.f32 %v841, %v805
    %v843 = vmul.f32 %v841, %v807
    %v844 = vmul.f32 %v841, %v809
    %v845 = vmul.f32 %v841, %v811
    %v846 = vmul.f32 %v841, %v813
    %v847 = vmul.f32 %v841, %v815
    %v848 = vmul.f32 %v841, %v817
    %v849 = vmul.f32 %v841, %v819
    %v850 = vsel %vm828, %v842, 0.0
    %v851 = vsel %vm828, %v843, 0.0
    %v852 = vadd.f32 %v850, %v851
    %v853 = vsel %vm828, %v844, 0.0
    %v854 = vadd.f32 %v852, %v853
    %v855 = vsel %vm828, %v845, 0.0
    %v856 = vadd.f32 %v854, %v855
    %v857 = vsel %vm828, %v846, 0.0
    %v858 = vsel %vm828, %v847, 0.0
    %v859 = vadd.f32 %v857, %v858
    %v860 = vsel %vm828, %v848, 0.0
    %v861 = vadd.f32 %v859, %v860
    %v862 = vsel %vm828, %v849, 0.0
    %v863 = vadd.f32 %v861, %v862
    %v864 = vmul.f32 %v856, %v856
    %v865 = vmul.f32 %v863, %v863
    %v866 = vsel %vm828, %v864, 0.0
    %867 = vadd.xlane.f32.xlu0 %v866
    %v868 = vpop.xlane.xlu0 %867
    %v869 = vsel %vm828, %v865, 0.0
    %870 = vadd.xlane.f32.xlu0 %v869
    %v871 = vpop.xlane.xlu0 %870
    %v872 = vrsqrt.pop %v868
    %v873 = vmul.f32 %v868, %v872
    %vm874 = vcmp.eq.f32.partialorder %v868, inf
    %v875 = vsel %vm874, %v868, %v873
    %vm876 = vcmp.eq.f32.partialorder %v868, 0.0
    %v877 = vand.u32 %v868, 2147483648
    %v878 = vsel %vm876, %v877, %v875
    %v879 = vrsqrt.pop %v871
    %v880 = vmul.f32 %v871, %v879
    %vm881 = vcmp.eq.f32.partialorder %v871, inf
    %v882 = vsel %vm881, %v871, %v880
    %vm883 = vcmp.eq.f32.partialorder %v871, 0.0
    %v884 = vand.u32 %v871, 2147483648
    %v885 = vsel %vm883, %v884, %v882
    %v886 = vmul.f32 %v856, %v878
    %v887 = vmul.f32 %v863, %v885
    %v888 = vadd.f32 %v868, 0.5
    %v889 = vadd.f32 %v871, 0.5
    %v890 = vrcp.pop %v888
    %v891 = vrcp.pop %v889
    %v892 = vmul.f32 %v886, %v890
    %v893 = vmul.f32 %v887, %v891
    %v896 = vlaneseq
    %v897 = vshrl.u32 %v896, 7
    %v898 = vsub.s32 0, %v897
    %v899 = vrot.slane %v892, %v898
    %901 = vbcast.lane.b32.xlu0 %v899, 256
    %v902 = vpop.permute.xlu0 %901
    %v903 = vlaneseq
    %v904 = vshrl.u32 %v903, 7
    %v905 = vsub.s32 1, %v904
    %v906 = vrot.slane %v892, %v905
    %908 = vbcast.lane.b32.xlu0 %v906, 256
    %v909 = vpop.permute.xlu0 %908
    %v910 = vlaneseq
    %v911 = vshrl.u32 %v910, 7
    %v912 = vsub.s32 2, %v911
    %v913 = vrot.slane %v892, %v912
    %915 = vbcast.lane.b32.xlu0 %v913, 256
    %v916 = vpop.permute.xlu0 %915
    %v917 = vlaneseq
    %v918 = vshrl.u32 %v917, 7
    %v919 = vsub.s32 0, %v918
    %v920 = vrot.slane %v893, %v919
    %922 = vbcast.lane.b32.xlu0 %v920, 256
    %v923 = vpop.permute.xlu0 %922
    %v924 = vlaneseq
    %v925 = vshrl.u32 %v924, 7
    %v926 = vsub.s32 1, %v925
    %v927 = vrot.slane %v893, %v926
    %929 = vbcast.lane.b32.xlu0 %v927, 256
    %v930 = vpop.permute.xlu0 %929
    %v931 = vlaneseq
    %v932 = vshrl.u32 %v931, 7
    %v933 = vsub.s32 2, %v932
    %v934 = vrot.slane %v893, %v933
    %936 = vbcast.lane.b32.xlu0 %v934, 256
    %v937 = vpop.permute.xlu0 %936
    %v944 = vmul.f32 %v610, %v902
    %v945 = vmul.f32 %v613, %v909
    %v946 = vmul.f32 %v616, %v916
    %v947 = vmul.f32 %v619, %v902
    %v948 = vmul.f32 %v622, %v909
    %v949 = vmul.f32 %v625, %v916
    %v950 = vmul.f32 %v628, %v902
    %v951 = vmul.f32 %v631, %v909
    %v952 = vmul.f32 %v634, %v916
    %v953 = vmul.f32 %v637, %v902
    %v954 = vmul.f32 %v640, %v909
    %v955 = vmul.f32 %v643, %v916
    %v956 = vmul.f32 %v646, %v923
    %v957 = vmul.f32 %v649, %v930
    %v958 = vmul.f32 %v652, %v937
    %v959 = vmul.f32 %v655, %v923
    %v960 = vmul.f32 %v658, %v930
    %v961 = vmul.f32 %v661, %v937
    %v962 = vmul.f32 %v664, %v923
    %v963 = vmul.f32 %v667, %v930
    %v964 = vmul.f32 %v670, %v937
    %v965 = vmul.f32 %v673, %v923
    %v966 = vmul.f32 %v676, %v930
    %v967 = vmul.f32 %v679, %v937
    %992 = vset.pattern.permute.xlu0 0
    %993 = vperm.xlu0 %992, %v944
    %v994 = vpop.permute.xlu0 %993
    %995 = vset.pattern.permute.xlu0 0
    %996 = vperm.xlu0 %995, %v945
    %v997 = vpop.permute.xlu0 %996
    %998 = vset.pattern.permute.xlu0 0
    %999 = vperm.xlu0 %998, %v946
    %v1000 = vpop.permute.xlu0 %999
    %1001 = vset.pattern.permute.xlu0 0
    %1002 = vperm.xlu0 %1001, %v947
    %v1003 = vpop.permute.xlu0 %1002
    %1004 = vset.pattern.permute.xlu0 0
    %1005 = vperm.xlu0 %1004, %v948
    %v1006 = vpop.permute.xlu0 %1005
    %1007 = vset.pattern.permute.xlu0 0
    %1008 = vperm.xlu0 %1007, %v949
    %v1009 = vpop.permute.xlu0 %1008
    %1010 = vset.pattern.permute.xlu0 0
    %1011 = vperm.xlu0 %1010, %v950
    %v1012 = vpop.permute.xlu0 %1011
    %1013 = vset.pattern.permute.xlu0 0
    %1014 = vperm.xlu0 %1013, %v951
    %v1015 = vpop.permute.xlu0 %1014
    %1016 = vset.pattern.permute.xlu0 0
    %1017 = vperm.xlu0 %1016, %v952
    %v1018 = vpop.permute.xlu0 %1017
    %1019 = vset.pattern.permute.xlu0 0
    %1020 = vperm.xlu0 %1019, %v953
    %v1021 = vpop.permute.xlu0 %1020
    %1022 = vset.pattern.permute.xlu0 0
    %1023 = vperm.xlu0 %1022, %v954
    %v1024 = vpop.permute.xlu0 %1023
    %1025 = vset.pattern.permute.xlu0 0
    %1026 = vperm.xlu0 %1025, %v955
    %v1027 = vpop.permute.xlu0 %1026
    %1028 = vset.pattern.permute.xlu0 0
    %1029 = vperm.xlu0 %1028, %v956
    %v1030 = vpop.permute.xlu0 %1029
    %1031 = vset.pattern.permute.xlu0 0
    %1032 = vperm.xlu0 %1031, %v957
    %v1033 = vpop.permute.xlu0 %1032
    %1034 = vset.pattern.permute.xlu0 0
    %1035 = vperm.xlu0 %1034, %v958
    %v1036 = vpop.permute.xlu0 %1035
    %1037 = vset.pattern.permute.xlu0 0
    %1038 = vperm.xlu0 %1037, %v959
    %v1039 = vpop.permute.xlu0 %1038
    %1040 = vset.pattern.permute.xlu0 0
    %1041 = vperm.xlu0 %1040, %v960
    %v1042 = vpop.permute.xlu0 %1041
    %1043 = vset.pattern.permute.xlu0 0
    %1044 = vperm.xlu0 %1043, %v961
    %v1045 = vpop.permute.xlu0 %1044
    %1046 = vset.pattern.permute.xlu0 0
    %1047 = vperm.xlu0 %1046, %v962
    %v1048 = vpop.permute.xlu0 %1047
    %1049 = vset.pattern.permute.xlu0 0
    %1050 = vperm.xlu0 %1049, %v963
    %v1051 = vpop.permute.xlu0 %1050
    %1052 = vset.pattern.permute.xlu0 0
    %1053 = vperm.xlu0 %1052, %v964
    %v1054 = vpop.permute.xlu0 %1053
    %1055 = vset.pattern.permute.xlu0 0
    %1056 = vperm.xlu0 %1055, %v965
    %v1057 = vpop.permute.xlu0 %1056
    %1058 = vset.pattern.permute.xlu0 0
    %1059 = vperm.xlu0 %1058, %v966
    %v1060 = vpop.permute.xlu0 %1059
    %1061 = vset.pattern.permute.xlu0 0
    %1062 = vperm.xlu0 %1061, %v967
    %v1063 = vpop.permute.xlu0 %1062
    %v1064 = vlaneseq
    %v1065 = vshrl.u32 %v1064, 7
    %v1066 = vsub.s32 %v705, %v1065
    %v1067 = vrot.slane %v994, %v1066
    %v1068 = vlaneseq
    %v1069 = vshrl.u32 %v1068, 7
    %v1070 = vsub.s32 %v705, %v1069
    %v1071 = vrot.slane %v997, %v1070
    %v1072 = vlaneseq
    %v1073 = vshrl.u32 %v1072, 7
    %v1074 = vsub.s32 %v705, %v1073
    %v1075 = vrot.slane %v1000, %v1074
    %v1076 = vlaneseq
    %v1077 = vshrl.u32 %v1076, 7
    %v1078 = vsub.s32 %v705, %v1077
    %v1079 = vrot.slane %v1003, %v1078
    %v1080 = vlaneseq
    %v1081 = vshrl.u32 %v1080, 7
    %v1082 = vsub.s32 %v705, %v1081
    %v1083 = vrot.slane %v1006, %v1082
    %v1084 = vlaneseq
    %v1085 = vshrl.u32 %v1084, 7
    %v1086 = vsub.s32 %v705, %v1085
    %v1087 = vrot.slane %v1009, %v1086
    %v1088 = vlaneseq
    %v1089 = vshrl.u32 %v1088, 7
    %v1090 = vsub.s32 %v705, %v1089
    %v1091 = vrot.slane %v1012, %v1090
    %v1092 = vlaneseq
    %v1093 = vshrl.u32 %v1092, 7
    %v1094 = vsub.s32 %v705, %v1093
    %v1095 = vrot.slane %v1015, %v1094
    %v1096 = vlaneseq
    %v1097 = vshrl.u32 %v1096, 7
    %v1098 = vsub.s32 %v705, %v1097
    %v1099 = vrot.slane %v1018, %v1098
    %v1100 = vlaneseq
    %v1101 = vshrl.u32 %v1100, 7
    %v1102 = vsub.s32 %v705, %v1101
    %v1103 = vrot.slane %v1021, %v1102
    %v1104 = vlaneseq
    %v1105 = vshrl.u32 %v1104, 7
    %v1106 = vsub.s32 %v705, %v1105
    %v1107 = vrot.slane %v1024, %v1106
    %v1108 = vlaneseq
    %v1109 = vshrl.u32 %v1108, 7
    %v1110 = vsub.s32 %v705, %v1109
    %v1111 = vrot.slane %v1027, %v1110
    %v1112 = vlaneseq
    %v1113 = vshrl.u32 %v1112, 7
    %v1114 = vsub.s32 %v705, %v1113
    %v1115 = vrot.slane %v1030, %v1114
    %v1116 = vlaneseq
    %v1117 = vshrl.u32 %v1116, 7
    %v1118 = vsub.s32 %v705, %v1117
    %v1119 = vrot.slane %v1033, %v1118
    %v1120 = vlaneseq
    %v1121 = vshrl.u32 %v1120, 7
    %v1122 = vsub.s32 %v705, %v1121
    %v1123 = vrot.slane %v1036, %v1122
    %v1124 = vlaneseq
    %v1125 = vshrl.u32 %v1124, 7
    %v1126 = vsub.s32 %v705, %v1125
    %v1127 = vrot.slane %v1039, %v1126
    %v1128 = vlaneseq
    %v1129 = vshrl.u32 %v1128, 7
    %v1130 = vsub.s32 %v705, %v1129
    %v1131 = vrot.slane %v1042, %v1130
    %v1132 = vlaneseq
    %v1133 = vshrl.u32 %v1132, 7
    %v1134 = vsub.s32 %v705, %v1133
    %v1135 = vrot.slane %v1045, %v1134
    %v1136 = vlaneseq
    %v1137 = vshrl.u32 %v1136, 7
    %v1138 = vsub.s32 %v705, %v1137
    %v1139 = vrot.slane %v1048, %v1138
    %v1140 = vlaneseq
    %v1141 = vshrl.u32 %v1140, 7
    %v1142 = vsub.s32 %v705, %v1141
    %v1143 = vrot.slane %v1051, %v1142
    %v1144 = vlaneseq
    %v1145 = vshrl.u32 %v1144, 7
    %v1146 = vsub.s32 %v705, %v1145
    %v1147 = vrot.slane %v1054, %v1146
    %v1148 = vlaneseq
    %v1149 = vshrl.u32 %v1148, 7
    %v1150 = vsub.s32 %v705, %v1149
    %v1151 = vrot.slane %v1057, %v1150
    %v1152 = vlaneseq
    %v1153 = vshrl.u32 %v1152, 7
    %v1154 = vsub.s32 %v705, %v1153
    %v1155 = vrot.slane %v1060, %v1154
    %v1156 = vlaneseq
    %v1157 = vshrl.u32 %v1156, 7
    %v1158 = vsub.s32 %v705, %v1157
    %v1159 = vrot.slane %v1063, %v1158
    %v1160 = vsel %vm802, %v1071, %v1067
    %v1161 = vsel %vm804, %v1075, %v1160
    %v1162 = vsel %vm802, %v1083, %v1079
    %v1163 = vsel %vm804, %v1087, %v1162
    %v1164 = vsel %vm802, %v1095, %v1091
    %v1165 = vsel %vm804, %v1099, %v1164
    %v1166 = vsel %vm802, %v1107, %v1103
    %v1167 = vsel %vm804, %v1111, %v1166
    %v1168 = vsel %vm802, %v1119, %v1115
    %v1169 = vsel %vm804, %v1123, %v1168
    %v1170 = vsel %vm802, %v1131, %v1127
    %v1171 = vsel %vm804, %v1135, %v1170
    %v1172 = vsel %vm802, %v1143, %v1139
    %v1173 = vsel %vm804, %v1147, %v1172
    %v1174 = vsel %vm802, %v1155, %v1151
    %v1175 = vsel %vm804, %v1159, %v1174
    %v1184 = vsel %vm828, %v1161, 0.0
    %1185 = vadd.xlane.f32.xlu0 %v1184
    %v1186 = vpop.xlane.xlu0 %1185
    %v1187 = vsel %vm828, %v1163, 0.0
    %1188 = vadd.xlane.f32.xlu0 %v1187
    %v1189 = vpop.xlane.xlu0 %1188
    %v1190 = vsel %vm828, %v1165, 0.0
    %1191 = vadd.xlane.f32.xlu0 %v1190
    %v1192 = vpop.xlane.xlu0 %1191
    %v1193 = vsel %vm828, %v1167, 0.0
    %1194 = vadd.xlane.f32.xlu0 %v1193
    %v1195 = vpop.xlane.xlu0 %1194
    %v1196 = vsel %vm828, %v1169, 0.0
    %1197 = vadd.xlane.f32.xlu0 %v1196
    %v1198 = vpop.xlane.xlu0 %1197
    %v1199 = vsel %vm828, %v1171, 0.0
    %1200 = vadd.xlane.f32.xlu0 %v1199
    %v1201 = vpop.xlane.xlu0 %1200
    %v1202 = vsel %vm828, %v1173, 0.0
    %1203 = vadd.xlane.f32.xlu0 %v1202
    %v1204 = vpop.xlane.xlu0 %1203
    %v1205 = vsel %vm828, %v1175, 0.0
    %1206 = vadd.xlane.f32.xlu0 %v1205
    %v1207 = vpop.xlane.xlu0 %1206
    %v1208 = vadd.f32 %v1186, 0.0
    %v1209 = vadd.f32 %v1189, 0.0
    %v1210 = vadd.f32 %v1192, 0.0
    %v1211 = vadd.f32 %v1195, 0.0
    %v1212 = vadd.f32 %v1198, 0.0
    %v1213 = vadd.f32 %v1201, 0.0
    %v1214 = vadd.f32 %v1204, 0.0
    %v1215 = vadd.f32 %v1207, 0.0
    %v1224 = vlaneseq
    %v1225 = vshrl.u32 %v1224, 7
    %v1226 = vsub.s32 %v705, %v1225
    %v1227 = vrot.slane %v1208, %v1226
    %v1228 = vlaneseq
    %v1229 = vshrl.u32 %v1228, 7
    %v1230 = vsub.s32 %v705, %v1229
    %v1231 = vrot.slane %v1209, %v1230
    %v1232 = vlaneseq
    %v1233 = vshrl.u32 %v1232, 7
    %v1234 = vsub.s32 %v705, %v1233
    %v1235 = vrot.slane %v1210, %v1234
    %v1236 = vlaneseq
    %v1237 = vshrl.u32 %v1236, 7
    %v1238 = vsub.s32 %v705, %v1237
    %v1239 = vrot.slane %v1211, %v1238
    %v1240 = vlaneseq
    %v1241 = vshrl.u32 %v1240, 7
    %v1242 = vsub.s32 %v705, %v1241
    %v1243 = vrot.slane %v1212, %v1242
    %v1244 = vlaneseq
    %v1245 = vshrl.u32 %v1244, 7
    %v1246 = vsub.s32 %v705, %v1245
    %v1247 = vrot.slane %v1213, %v1246
    %v1248 = vlaneseq
    %v1249 = vshrl.u32 %v1248, 7
    %v1250 = vsub.s32 %v705, %v1249
    %v1251 = vrot.slane %v1214, %v1250
    %v1252 = vlaneseq
    %v1253 = vshrl.u32 %v1252, 7
    %v1254 = vsub.s32 %v705, %v1253
    %v1255 = vrot.slane %v1215, %v1254
    %v1256 = vsel %vm802, %v1231, %v1227
    %v1257 = vsel %vm804, %v1235, %v1256
    %vm1258 = vcmask 1043459
    %v1259 = vsel %vm1258, %v1239, %v1257
    %v1260 = vsel %vm802, %v1247, %v1243
    %v1261 = vsel %vm804, %v1251, %v1260
    %v1262 = vsel %vm1258, %v1255, %v1261
    %vm1265 = vcmask 19456
    %v1266 = vsel %vm1265, %v1259, -inf
    %1267 = vmax.xlane.f32.xlu0 %v1266
    %v1268 = vpop.xlane.xlu0 %1267
    %v1269 = vsel %vm1265, %v1262, -inf
    %1270 = vmax.xlane.f32.xlu0 %v1269
    %v1271 = vpop.xlane.xlu0 %1270
    %v1274 = vlaneseq
    %v1275 = vshrl.u32 %v1274, 7
    %v1276 = vsub.s32 0, %v1275
    %v1277 = vrot.slane %v1268, %v1276
    %v1278 = vlaneseq
    %v1279 = vshrl.u32 %v1278, 7
    %v1280 = vsub.s32 1, %v1279
    %v1281 = vrot.slane %v1268, %v1280
    %v1282 = vlaneseq
    %v1283 = vshrl.u32 %v1282, 7
    %v1284 = vsub.s32 2, %v1283
    %v1285 = vrot.slane %v1268, %v1284
    %v1286 = vlaneseq
    %v1287 = vshrl.u32 %v1286, 7
    %v1288 = vsub.s32 3, %v1287
    %v1289 = vrot.slane %v1268, %v1288
    %v1290 = vlaneseq
    %v1291 = vshrl.u32 %v1290, 7
    %v1292 = vsub.s32 0, %v1291
    %v1293 = vrot.slane %v1271, %v1292
    %v1294 = vlaneseq
    %v1295 = vshrl.u32 %v1294, 7
    %v1296 = vsub.s32 1, %v1295
    %v1297 = vrot.slane %v1271, %v1296
    %v1298 = vlaneseq
    %v1299 = vshrl.u32 %v1298, 7
    %v1300 = vsub.s32 2, %v1299
    %v1301 = vrot.slane %v1271, %v1300
    %v1302 = vlaneseq
    %v1303 = vshrl.u32 %v1302, 7
    %v1304 = vsub.s32 3, %v1303
    %v1305 = vrot.slane %v1271, %v1304
    %v1314 = vsub.f32 %v1208, %v1277
    %v1315 = vsub.f32 %v1209, %v1281
    %v1316 = vsub.f32 %v1210, %v1285
    %v1317 = vsub.f32 %v1211, %v1289
    %v1318 = vsub.f32 %v1212, %v1293
    %v1319 = vsub.f32 %v1213, %v1297
    %v1320 = vsub.f32 %v1214, %v1301
    %v1321 = vsub.f32 %v1215, %v1305
    %v1322 = vmul.f32 %v1314, 1.442695
    %v1323 = vpow.pop %v1322
    %v1324 = vmul.f32 %v1315, 1.442695
    %v1325 = vpow.pop %v1324
    %v1326 = vmul.f32 %v1316, 1.442695
    %v1327 = vpow.pop %v1326
    %v1328 = vmul.f32 %v1317, 1.442695
    %v1329 = vpow.pop %v1328
    %v1330 = vmul.f32 %v1318, 1.442695
    %v1331 = vpow.pop %v1330
    %v1332 = vmul.f32 %v1319, 1.442695
    %v1333 = vpow.pop %v1332
    %v1334 = vmul.f32 %v1320, 1.442695
    %v1335 = vpow.pop %v1334
    %v1336 = vmul.f32 %v1321, 1.442695
    %v1337 = vpow.pop %v1336
    %1346 = vset.pattern.permute.xlu0 0
    %1347 = vperm.xlu0 %1346, %v1323
    %v1348 = vpop.permute.xlu0 %1347
    %1349 = vset.pattern.permute.xlu0 0
    %1350 = vperm.xlu0 %1349, %v1325
    %v1351 = vpop.permute.xlu0 %1350
    %1352 = vset.pattern.permute.xlu0 0
    %1353 = vperm.xlu0 %1352, %v1327
    %v1354 = vpop.permute.xlu0 %1353
    %1355 = vset.pattern.permute.xlu0 0
    %1356 = vperm.xlu0 %1355, %v1329
    %v1357 = vpop.permute.xlu0 %1356
    %1358 = vset.pattern.permute.xlu0 0
    %1359 = vperm.xlu0 %1358, %v1331
    %v1360 = vpop.permute.xlu0 %1359
    %1361 = vset.pattern.permute.xlu0 0
    %1362 = vperm.xlu0 %1361, %v1333
    %v1363 = vpop.permute.xlu0 %1362
    %1364 = vset.pattern.permute.xlu0 0
    %1365 = vperm.xlu0 %1364, %v1335
    %v1366 = vpop.permute.xlu0 %1365
    %1367 = vset.pattern.permute.xlu0 0
    %1368 = vperm.xlu0 %1367, %v1337
    %v1369 = vpop.permute.xlu0 %1368
    %v1370 = vlaneseq
    %v1371 = vshrl.u32 %v1370, 7
    %v1372 = vsub.s32 %v705, %v1371
    %v1373 = vrot.slane %v1348, %v1372
    %v1374 = vlaneseq
    %v1375 = vshrl.u32 %v1374, 7
    %v1376 = vsub.s32 %v705, %v1375
    %v1377 = vrot.slane %v1351, %v1376
    %v1378 = vlaneseq
    %v1379 = vshrl.u32 %v1378, 7
    %v1380 = vsub.s32 %v705, %v1379
    %v1381 = vrot.slane %v1354, %v1380
    %v1382 = vlaneseq
    %v1383 = vshrl.u32 %v1382, 7
    %v1384 = vsub.s32 %v705, %v1383
    %v1385 = vrot.slane %v1357, %v1384
    %v1386 = vlaneseq
    %v1387 = vshrl.u32 %v1386, 7
    %v1388 = vsub.s32 %v705, %v1387
    %v1389 = vrot.slane %v1360, %v1388
    %v1390 = vlaneseq
    %v1391 = vshrl.u32 %v1390, 7
    %v1392 = vsub.s32 %v705, %v1391
    %v1393 = vrot.slane %v1363, %v1392
    %v1394 = vlaneseq
    %v1395 = vshrl.u32 %v1394, 7
    %v1396 = vsub.s32 %v705, %v1395
    %v1397 = vrot.slane %v1366, %v1396
    %v1398 = vlaneseq
    %v1399 = vshrl.u32 %v1398, 7
    %v1400 = vsub.s32 %v705, %v1399
    %v1401 = vrot.slane %v1369, %v1400
    %v1402 = vsel %vm802, %v1377, %v1373
    %v1403 = vsel %vm804, %v1381, %v1402
    %v1404 = vsel %vm1258, %v1385, %v1403
    %v1405 = vsel %vm802, %v1393, %v1389
    %v1406 = vsel %vm804, %v1397, %v1405
    %v1407 = vsel %vm1258, %v1401, %v1406
    %v1410 = vsel %vm1265, %v1404, 0.0
    %1411 = vadd.xlane.f32.xlu0 %v1410
    %v1412 = vpop.xlane.xlu0 %1411
    %v1413 = vsel %vm1265, %v1407, 0.0
    %1414 = vadd.xlane.f32.xlu0 %v1413
    %v1415 = vpop.xlane.xlu0 %1414
    %v1416 = vrcp.pop %v1412
    %v1417 = vrcp.pop %v1415
    %v1420 = vlaneseq
    %v1421 = vshrl.u32 %v1420, 7
    %v1422 = vsub.s32 0, %v1421
    %v1423 = vrot.slane %v1416, %v1422
    %v1424 = vlaneseq
    %v1425 = vshrl.u32 %v1424, 7
    %v1426 = vsub.s32 1, %v1425
    %v1427 = vrot.slane %v1416, %v1426
    %v1428 = vlaneseq
    %v1429 = vshrl.u32 %v1428, 7
    %v1430 = vsub.s32 2, %v1429
    %v1431 = vrot.slane %v1416, %v1430
    %v1432 = vlaneseq
    %v1433 = vshrl.u32 %v1432, 7
    %v1434 = vsub.s32 3, %v1433
    %v1435 = vrot.slane %v1416, %v1434
    %v1436 = vlaneseq
    %v1437 = vshrl.u32 %v1436, 7
    %v1438 = vsub.s32 0, %v1437
    %v1439 = vrot.slane %v1417, %v1438
    %v1440 = vlaneseq
    %v1441 = vshrl.u32 %v1440, 7
    %v1442 = vsub.s32 1, %v1441
    %v1443 = vrot.slane %v1417, %v1442
    %v1444 = vlaneseq
    %v1445 = vshrl.u32 %v1444, 7
    %v1446 = vsub.s32 2, %v1445
    %v1447 = vrot.slane %v1417, %v1446
    %v1448 = vlaneseq
    %v1449 = vshrl.u32 %v1448, 7
    %v1450 = vsub.s32 3, %v1449
    %v1451 = vrot.slane %v1417, %v1450
    %v1460 = vmul.f32 %v1323, %v1423
    %v1461 = vmul.f32 %v1325, %v1427
    %v1462 = vmul.f32 %v1327, %v1431
    %v1463 = vmul.f32 %v1329, %v1435
    %v1464 = vmul.f32 %v1331, %v1439
    %v1465 = vmul.f32 %v1333, %v1443
    %v1466 = vmul.f32 %v1335, %v1447
    %v1467 = vmul.f32 %v1337, %v1451
    %1469 = vset.pattern.permute.xlu0 0
    %1470 = vperm.xlu0 %1469, %v1460
    %v1471 = vpop.permute.xlu0 %1470
    %1474 = vset.pattern.permute.xlu0 0
    %1475 = vperm.xlu0 %1474, %v1461
    %v1476 = vpop.permute.xlu0 %1475
    %1479 = vset.pattern.permute.xlu0 0
    %1480 = vperm.xlu0 %1479, %v1462
    %v1481 = vpop.permute.xlu0 %1480
    %1484 = vset.pattern.permute.xlu0 0
    %1485 = vperm.xlu0 %1484, %v1463
    %v1486 = vpop.permute.xlu0 %1485
    %1489 = vset.pattern.permute.xlu0 0
    %1490 = vperm.xlu0 %1489, %v1464
    %v1491 = vpop.permute.xlu0 %1490
    %1494 = vset.pattern.permute.xlu0 0
    %1495 = vperm.xlu0 %1494, %v1465
    %v1496 = vpop.permute.xlu0 %1495
    %1499 = vset.pattern.permute.xlu0 0
    %1500 = vperm.xlu0 %1499, %v1466
    %v1501 = vpop.permute.xlu0 %1500
    %1504 = vset.pattern.permute.xlu0 0
    %1505 = vperm.xlu0 %1504, %v1467
    %v1506 = vpop.permute.xlu0 %1505
    %v1508 = vmul.f32 %v1471, %v805
    %v1509 = vmul.f32 %v1476, %v807
    %v1510 = vmul.f32 %v1481, %v809
    %v1511 = vmul.f32 %v1486, %v811
    %v1512 = vmul.f32 %v1491, %v813
    %v1513 = vmul.f32 %v1496, %v815
    %v1514 = vmul.f32 %v1501, %v817
    %v1515 = vmul.f32 %v1506, %v819
    %v1516 = vsel %vm828, %v1508, 0.0
    %v1517 = vsel %vm828, %v1509, 0.0
    %v1518 = vadd.f32 %v1516, %v1517
    %v1519 = vsel %vm828, %v1510, 0.0
    %v1520 = vadd.f32 %v1518, %v1519
    %v1521 = vsel %vm828, %v1511, 0.0
    %v1522 = vadd.f32 %v1520, %v1521
    %v1523 = vsel %vm828, %v1512, 0.0
    %v1524 = vsel %vm828, %v1513, 0.0
    %v1525 = vadd.f32 %v1523, %v1524
    %v1526 = vsel %vm828, %v1514, 0.0
    %v1527 = vadd.f32 %v1525, %v1526
    %v1528 = vsel %vm828, %v1515, 0.0
    %v1529 = vadd.f32 %v1527, %v1528
    %v1530 = vmul.f32 %v1522, %v1522
    %v1531 = vmul.f32 %v1529, %v1529
    %v1532 = vsel %vm828, %v1530, 0.0
    %1533 = vadd.xlane.f32.xlu0 %v1532
    %v1534 = vpop.xlane.xlu0 %1533
    %v1535 = vsel %vm828, %v1531, 0.0
    %1536 = vadd.xlane.f32.xlu0 %v1535
    %v1537 = vpop.xlane.xlu0 %1536
    %v1538 = vrsqrt.pop %v1534
    %v1539 = vmul.f32 %v1534, %v1538
    %vm1540 = vcmp.eq.f32.partialorder %v1534, inf
    %v1541 = vsel %vm1540, %v1534, %v1539
    %vm1542 = vcmp.eq.f32.partialorder %v1534, 0.0
    %v1543 = vand.u32 %v1534, 2147483648
    %v1544 = vsel %vm1542, %v1543, %v1541
    %v1545 = vrsqrt.pop %v1537
    %v1546 = vmul.f32 %v1537, %v1545
    %vm1547 = vcmp.eq.f32.partialorder %v1537, inf
    %v1548 = vsel %vm1547, %v1537, %v1546
    %vm1549 = vcmp.eq.f32.partialorder %v1537, 0.0
    %v1550 = vand.u32 %v1537, 2147483648
    %v1551 = vsel %vm1549, %v1550, %v1548
    %v1552 = vmul.f32 %v1522, %v1544
    %v1553 = vmul.f32 %v1529, %v1551
    %v1554 = vadd.f32 %v1534, 0.5
    %v1555 = vadd.f32 %v1537, 0.5
    %v1556 = vrcp.pop %v1554
    %v1557 = vrcp.pop %v1555
    %v1558 = vmul.f32 %v1552, %v1556
    %v1559 = vmul.f32 %v1553, %v1557
    %v1562 = vlaneseq
    %v1563 = vshrl.u32 %v1562, 7
    %v1564 = vsub.s32 0, %v1563
    %v1565 = vrot.slane %v1558, %v1564
    %1567 = vbcast.lane.b32.xlu0 %v1565, 256
    %v1568 = vpop.permute.xlu0 %1567
    %v1569 = vlaneseq
    %v1570 = vshrl.u32 %v1569, 7
    %v1571 = vsub.s32 1, %v1570
    %v1572 = vrot.slane %v1558, %v1571
    %1574 = vbcast.lane.b32.xlu0 %v1572, 256
    %v1575 = vpop.permute.xlu0 %1574
    %v1576 = vlaneseq
    %v1577 = vshrl.u32 %v1576, 7
    %v1578 = vsub.s32 2, %v1577
    %v1579 = vrot.slane %v1558, %v1578
    %1581 = vbcast.lane.b32.xlu0 %v1579, 256
    %v1582 = vpop.permute.xlu0 %1581
    %v1583 = vlaneseq
    %v1584 = vshrl.u32 %v1583, 7
    %v1585 = vsub.s32 0, %v1584
    %v1586 = vrot.slane %v1559, %v1585
    %1588 = vbcast.lane.b32.xlu0 %v1586, 256
    %v1589 = vpop.permute.xlu0 %1588
    %v1590 = vlaneseq
    %v1591 = vshrl.u32 %v1590, 7
    %v1592 = vsub.s32 1, %v1591
    %v1593 = vrot.slane %v1559, %v1592
    %1595 = vbcast.lane.b32.xlu0 %v1593, 256
    %v1596 = vpop.permute.xlu0 %1595
    %v1597 = vlaneseq
    %v1598 = vshrl.u32 %v1597, 7
    %v1599 = vsub.s32 2, %v1598
    %v1600 = vrot.slane %v1559, %v1599
    %1602 = vbcast.lane.b32.xlu0 %v1600, 256
    %v1603 = vpop.permute.xlu0 %1602
    %v1610 = vmul.f32 %v610, %v1568
    %v1611 = vmul.f32 %v613, %v1575
    %v1612 = vmul.f32 %v616, %v1582
    %v1613 = vmul.f32 %v619, %v1568
    %v1614 = vmul.f32 %v622, %v1575
    %v1615 = vmul.f32 %v625, %v1582
    %v1616 = vmul.f32 %v628, %v1568
    %v1617 = vmul.f32 %v631, %v1575
    %v1618 = vmul.f32 %v634, %v1582
    %v1619 = vmul.f32 %v637, %v1568
    %v1620 = vmul.f32 %v640, %v1575
    %v1621 = vmul.f32 %v643, %v1582
    %v1622 = vmul.f32 %v646, %v1589
    %v1623 = vmul.f32 %v649, %v1596
    %v1624 = vmul.f32 %v652, %v1603
    %v1625 = vmul.f32 %v655, %v1589
    %v1626 = vmul.f32 %v658, %v1596
    %v1627 = vmul.f32 %v661, %v1603
    %v1628 = vmul.f32 %v664, %v1589
    %v1629 = vmul.f32 %v667, %v1596
    %v1630 = vmul.f32 %v670, %v1603
    %v1631 = vmul.f32 %v673, %v1589
    %v1632 = vmul.f32 %v676, %v1596
    %v1633 = vmul.f32 %v679, %v1603
    %1658 = vset.pattern.permute.xlu0 0
    %1659 = vperm.xlu0 %1658, %v1610
    %v1660 = vpop.permute.xlu0 %1659
    %1661 = vset.pattern.permute.xlu0 0
    %1662 = vperm.xlu0 %1661, %v1611
    %v1663 = vpop.permute.xlu0 %1662
    %1664 = vset.pattern.permute.xlu0 0
    %1665 = vperm.xlu0 %1664, %v1612
    %v1666 = vpop.permute.xlu0 %1665
    %1667 = vset.pattern.permute.xlu0 0
    %1668 = vperm.xlu0 %1667, %v1613
    %v1669 = vpop.permute.xlu0 %1668
    %1670 = vset.pattern.permute.xlu0 0
    %1671 = vperm.xlu0 %1670, %v1614
    %v1672 = vpop.permute.xlu0 %1671
    %1673 = vset.pattern.permute.xlu0 0
    %1674 = vperm.xlu0 %1673, %v1615
    %v1675 = vpop.permute.xlu0 %1674
    %1676 = vset.pattern.permute.xlu0 0
    %1677 = vperm.xlu0 %1676, %v1616
    %v1678 = vpop.permute.xlu0 %1677
    %1679 = vset.pattern.permute.xlu0 0
    %1680 = vperm.xlu0 %1679, %v1617
    %v1681 = vpop.permute.xlu0 %1680
    %1682 = vset.pattern.permute.xlu0 0
    %1683 = vperm.xlu0 %1682, %v1618
    %v1684 = vpop.permute.xlu0 %1683
    %1685 = vset.pattern.permute.xlu0 0
    %1686 = vperm.xlu0 %1685, %v1619
    %v1687 = vpop.permute.xlu0 %1686
    %1688 = vset.pattern.permute.xlu0 0
    %1689 = vperm.xlu0 %1688, %v1620
    %v1690 = vpop.permute.xlu0 %1689
    %1691 = vset.pattern.permute.xlu0 0
    %1692 = vperm.xlu0 %1691, %v1621
    %v1693 = vpop.permute.xlu0 %1692
    %1694 = vset.pattern.permute.xlu0 0
    %1695 = vperm.xlu0 %1694, %v1622
    %v1696 = vpop.permute.xlu0 %1695
    %1697 = vset.pattern.permute.xlu0 0
    %1698 = vperm.xlu0 %1697, %v1623
    %v1699 = vpop.permute.xlu0 %1698
    %1700 = vset.pattern.permute.xlu0 0
    %1701 = vperm.xlu0 %1700, %v1624
    %v1702 = vpop.permute.xlu0 %1701
    %1703 = vset.pattern.permute.xlu0 0
    %1704 = vperm.xlu0 %1703, %v1625
    %v1705 = vpop.permute.xlu0 %1704
    %1706 = vset.pattern.permute.xlu0 0
    %1707 = vperm.xlu0 %1706, %v1626
    %v1708 = vpop.permute.xlu0 %1707
    %1709 = vset.pattern.permute.xlu0 0
    %1710 = vperm.xlu0 %1709, %v1627
    %v1711 = vpop.permute.xlu0 %1710
    %1712 = vset.pattern.permute.xlu0 0
    %1713 = vperm.xlu0 %1712, %v1628
    %v1714 = vpop.permute.xlu0 %1713
    %1715 = vset.pattern.permute.xlu0 0
    %1716 = vperm.xlu0 %1715, %v1629
    %v1717 = vpop.permute.xlu0 %1716
    %1718 = vset.pattern.permute.xlu0 0
    %1719 = vperm.xlu0 %1718, %v1630
    %v1720 = vpop.permute.xlu0 %1719
    %1721 = vset.pattern.permute.xlu0 0
    %1722 = vperm.xlu0 %1721, %v1631
    %v1723 = vpop.permute.xlu0 %1722
    %1724 = vset.pattern.permute.xlu0 0
    %1725 = vperm.xlu0 %1724, %v1632
    %v1726 = vpop.permute.xlu0 %1725
    %1727 = vset.pattern.permute.xlu0 0
    %1728 = vperm.xlu0 %1727, %v1633
    %v1729 = vpop.permute.xlu0 %1728
    %v1730 = vlaneseq
    %v1731 = vshrl.u32 %v1730, 7
    %v1732 = vsub.s32 %v705, %v1731
    %v1733 = vrot.slane %v1660, %v1732
    %v1734 = vlaneseq
    %v1735 = vshrl.u32 %v1734, 7
    %v1736 = vsub.s32 %v705, %v1735
    %v1737 = vrot.slane %v1663, %v1736
    %v1738 = vlaneseq
    %v1739 = vshrl.u32 %v1738, 7
    %v1740 = vsub.s32 %v705, %v1739
    %v1741 = vrot.slane %v1666, %v1740
    %v1742 = vlaneseq
    %v1743 = vshrl.u32 %v1742, 7
    %v1744 = vsub.s32 %v705, %v1743
    %v1745 = vrot.slane %v1669, %v1744
    %v1746 = vlaneseq
    %v1747 = vshrl.u32 %v1746, 7
    %v1748 = vsub.s32 %v705, %v1747
    %v1749 = vrot.slane %v1672, %v1748
    %v1750 = vlaneseq
    %v1751 = vshrl.u32 %v1750, 7
    %v1752 = vsub.s32 %v705, %v1751
    %v1753 = vrot.slane %v1675, %v1752
    %v1754 = vlaneseq
    %v1755 = vshrl.u32 %v1754, 7
    %v1756 = vsub.s32 %v705, %v1755
    %v1757 = vrot.slane %v1678, %v1756
    %v1758 = vlaneseq
    %v1759 = vshrl.u32 %v1758, 7
    %v1760 = vsub.s32 %v705, %v1759
    %v1761 = vrot.slane %v1681, %v1760
    %v1762 = vlaneseq
    %v1763 = vshrl.u32 %v1762, 7
    %v1764 = vsub.s32 %v705, %v1763
    %v1765 = vrot.slane %v1684, %v1764
    %v1766 = vlaneseq
    %v1767 = vshrl.u32 %v1766, 7
    %v1768 = vsub.s32 %v705, %v1767
    %v1769 = vrot.slane %v1687, %v1768
    %v1770 = vlaneseq
    %v1771 = vshrl.u32 %v1770, 7
    %v1772 = vsub.s32 %v705, %v1771
    %v1773 = vrot.slane %v1690, %v1772
    %v1774 = vlaneseq
    %v1775 = vshrl.u32 %v1774, 7
    %v1776 = vsub.s32 %v705, %v1775
    %v1777 = vrot.slane %v1693, %v1776
    %v1778 = vlaneseq
    %v1779 = vshrl.u32 %v1778, 7
    %v1780 = vsub.s32 %v705, %v1779
    %v1781 = vrot.slane %v1696, %v1780
    %v1782 = vlaneseq
    %v1783 = vshrl.u32 %v1782, 7
    %v1784 = vsub.s32 %v705, %v1783
    %v1785 = vrot.slane %v1699, %v1784
    %v1786 = vlaneseq
    %v1787 = vshrl.u32 %v1786, 7
    %v1788 = vsub.s32 %v705, %v1787
    %v1789 = vrot.slane %v1702, %v1788
    %v1790 = vlaneseq
    %v1791 = vshrl.u32 %v1790, 7
    %v1792 = vsub.s32 %v705, %v1791
    %v1793 = vrot.slane %v1705, %v1792
    %v1794 = vlaneseq
    %v1795 = vshrl.u32 %v1794, 7
    %v1796 = vsub.s32 %v705, %v1795
    %v1797 = vrot.slane %v1708, %v1796
    %v1798 = vlaneseq
    %v1799 = vshrl.u32 %v1798, 7
    %v1800 = vsub.s32 %v705, %v1799
    %v1801 = vrot.slane %v1711, %v1800
    %v1802 = vlaneseq
    %v1803 = vshrl.u32 %v1802, 7
    %v1804 = vsub.s32 %v705, %v1803
    %v1805 = vrot.slane %v1714, %v1804
    %v1806 = vlaneseq
    %v1807 = vshrl.u32 %v1806, 7
    %v1808 = vsub.s32 %v705, %v1807
    %v1809 = vrot.slane %v1717, %v1808
    %v1810 = vlaneseq
    %v1811 = vshrl.u32 %v1810, 7
    %v1812 = vsub.s32 %v705, %v1811
    %v1813 = vrot.slane %v1720, %v1812
    %v1814 = vlaneseq
    %v1815 = vshrl.u32 %v1814, 7
    %v1816 = vsub.s32 %v705, %v1815
    %v1817 = vrot.slane %v1723, %v1816
    %v1818 = vlaneseq
    %v1819 = vshrl.u32 %v1818, 7
    %v1820 = vsub.s32 %v705, %v1819
    %v1821 = vrot.slane %v1726, %v1820
    %v1822 = vlaneseq
    %v1823 = vshrl.u32 %v1822, 7
    %v1824 = vsub.s32 %v705, %v1823
    %v1825 = vrot.slane %v1729, %v1824
    %v1826 = vsel %vm802, %v1737, %v1733
    %v1827 = vsel %vm804, %v1741, %v1826
    %v1828 = vsel %vm802, %v1749, %v1745
    %v1829 = vsel %vm804, %v1753, %v1828
    %v1830 = vsel %vm802, %v1761, %v1757
    %v1831 = vsel %vm804, %v1765, %v1830
    %v1832 = vsel %vm802, %v1773, %v1769
    %v1833 = vsel %vm804, %v1777, %v1832
    %v1834 = vsel %vm802, %v1785, %v1781
    %v1835 = vsel %vm804, %v1789, %v1834
    %v1836 = vsel %vm802, %v1797, %v1793
    %v1837 = vsel %vm804, %v1801, %v1836
    %v1838 = vsel %vm802, %v1809, %v1805
    %v1839 = vsel %vm804, %v1813, %v1838
    %v1840 = vsel %vm802, %v1821, %v1817
    %v1841 = vsel %vm804, %v1825, %v1840
    %v1850 = vsel %vm828, %v1827, 0.0
    %1851 = vadd.xlane.f32.xlu0 %v1850
    %v1852 = vpop.xlane.xlu0 %1851
    %v1853 = vsel %vm828, %v1829, 0.0
    %1854 = vadd.xlane.f32.xlu0 %v1853
    %v1855 = vpop.xlane.xlu0 %1854
    %v1856 = vsel %vm828, %v1831, 0.0
    %1857 = vadd.xlane.f32.xlu0 %v1856
    %v1858 = vpop.xlane.xlu0 %1857
    %v1859 = vsel %vm828, %v1833, 0.0
    %1860 = vadd.xlane.f32.xlu0 %v1859
    %v1861 = vpop.xlane.xlu0 %1860
    %v1862 = vsel %vm828, %v1835, 0.0
    %1863 = vadd.xlane.f32.xlu0 %v1862
    %v1864 = vpop.xlane.xlu0 %1863
    %v1865 = vsel %vm828, %v1837, 0.0
    %1866 = vadd.xlane.f32.xlu0 %v1865
    %v1867 = vpop.xlane.xlu0 %1866
    %v1868 = vsel %vm828, %v1839, 0.0
    %1869 = vadd.xlane.f32.xlu0 %v1868
    %v1870 = vpop.xlane.xlu0 %1869
    %v1871 = vsel %vm828, %v1841, 0.0
    %1872 = vadd.xlane.f32.xlu0 %v1871
    %v1873 = vpop.xlane.xlu0 %1872
    %v1874 = vadd.f32 %v1208, %v1852
    %v1875 = vadd.f32 %v1209, %v1855
    %v1876 = vadd.f32 %v1210, %v1858
    %v1877 = vadd.f32 %v1211, %v1861
    %v1878 = vadd.f32 %v1212, %v1864
    %v1879 = vadd.f32 %v1213, %v1867
    %v1880 = vadd.f32 %v1214, %v1870
    %v1881 = vadd.f32 %v1215, %v1873
    %v1890 = vlaneseq
    %v1891 = vshrl.u32 %v1890, 7
    %v1892 = vsub.s32 %v705, %v1891
    %v1893 = vrot.slane %v1874, %v1892
    %v1894 = vlaneseq
    %v1895 = vshrl.u32 %v1894, 7
    %v1896 = vsub.s32 %v705, %v1895
    %v1897 = vrot.slane %v1875, %v1896
    %v1898 = vlaneseq
    %v1899 = vshrl.u32 %v1898, 7
    %v1900 = vsub.s32 %v705, %v1899
    %v1901 = vrot.slane %v1876, %v1900
    %v1902 = vlaneseq
    %v1903 = vshrl.u32 %v1902, 7
    %v1904 = vsub.s32 %v705, %v1903
    %v1905 = vrot.slane %v1877, %v1904
    %v1906 = vlaneseq
    %v1907 = vshrl.u32 %v1906, 7
    %v1908 = vsub.s32 %v705, %v1907
    %v1909 = vrot.slane %v1878, %v1908
    %v1910 = vlaneseq
    %v1911 = vshrl.u32 %v1910, 7
    %v1912 = vsub.s32 %v705, %v1911
    %v1913 = vrot.slane %v1879, %v1912
    %v1914 = vlaneseq
    %v1915 = vshrl.u32 %v1914, 7
    %v1916 = vsub.s32 %v705, %v1915
    %v1917 = vrot.slane %v1880, %v1916
    %v1918 = vlaneseq
    %v1919 = vshrl.u32 %v1918, 7
    %v1920 = vsub.s32 %v705, %v1919
    %v1921 = vrot.slane %v1881, %v1920
    %v1922 = vsel %vm802, %v1897, %v1893
    %v1923 = vsel %vm804, %v1901, %v1922
    %v1924 = vsel %vm1258, %v1905, %v1923
    %v1925 = vsel %vm802, %v1913, %v1909
    %v1926 = vsel %vm804, %v1917, %v1925
    %v1927 = vsel %vm1258, %v1921, %v1926
    %v1930 = vsel %vm1265, %v1924, -inf
    %1931 = vmax.xlane.f32.xlu0 %v1930
    %v1932 = vpop.xlane.xlu0 %1931
    %v1933 = vsel %vm1265, %v1927, -inf
    %1934 = vmax.xlane.f32.xlu0 %v1933
    %v1935 = vpop.xlane.xlu0 %1934
    %v1938 = vlaneseq
    %v1939 = vshrl.u32 %v1938, 7
    %v1940 = vsub.s32 0, %v1939
    %v1941 = vrot.slane %v1932, %v1940
    %v1942 = vlaneseq
    %v1943 = vshrl.u32 %v1942, 7
    %v1944 = vsub.s32 1, %v1943
    %v1945 = vrot.slane %v1932, %v1944
    %v1946 = vlaneseq
    %v1947 = vshrl.u32 %v1946, 7
    %v1948 = vsub.s32 2, %v1947
    %v1949 = vrot.slane %v1932, %v1948
    %v1950 = vlaneseq
    %v1951 = vshrl.u32 %v1950, 7
    %v1952 = vsub.s32 3, %v1951
    %v1953 = vrot.slane %v1932, %v1952
    %v1954 = vlaneseq
    %v1955 = vshrl.u32 %v1954, 7
    %v1956 = vsub.s32 0, %v1955
    %v1957 = vrot.slane %v1935, %v1956
    %v1958 = vlaneseq
    %v1959 = vshrl.u32 %v1958, 7
    %v1960 = vsub.s32 1, %v1959
    %v1961 = vrot.slane %v1935, %v1960
    %v1962 = vlaneseq
    %v1963 = vshrl.u32 %v1962, 7
    %v1964 = vsub.s32 2, %v1963
    %v1965 = vrot.slane %v1935, %v1964
    %v1966 = vlaneseq
    %v1967 = vshrl.u32 %v1966, 7
    %v1968 = vsub.s32 3, %v1967
    %v1969 = vrot.slane %v1935, %v1968
    %v1978 = vsub.f32 %v1874, %v1941
    %v1979 = vsub.f32 %v1875, %v1945
    %v1980 = vsub.f32 %v1876, %v1949
    %v1981 = vsub.f32 %v1877, %v1953
    %v1982 = vsub.f32 %v1878, %v1957
    %v1983 = vsub.f32 %v1879, %v1961
    %v1984 = vsub.f32 %v1880, %v1965
    %v1985 = vsub.f32 %v1881, %v1969
    %v1986 = vmul.f32 %v1978, 1.442695
    %v1987 = vpow.pop %v1986
    %v1988 = vmul.f32 %v1979, 1.442695
    %v1989 = vpow.pop %v1988
    %v1990 = vmul.f32 %v1980, 1.442695
    %v1991 = vpow.pop %v1990
    %v1992 = vmul.f32 %v1981, 1.442695
    %v1993 = vpow.pop %v1992
    %v1994 = vmul.f32 %v1982, 1.442695
    %v1995 = vpow.pop %v1994
    %v1996 = vmul.f32 %v1983, 1.442695
    %v1997 = vpow.pop %v1996
    %v1998 = vmul.f32 %v1984, 1.442695
    %v1999 = vpow.pop %v1998
    %v2000 = vmul.f32 %v1985, 1.442695
    %v2001 = vpow.pop %v2000
    %2010 = vset.pattern.permute.xlu0 0
    %2011 = vperm.xlu0 %2010, %v1987
    %v2012 = vpop.permute.xlu0 %2011
    %2013 = vset.pattern.permute.xlu0 0
    %2014 = vperm.xlu0 %2013, %v1989
    %v2015 = vpop.permute.xlu0 %2014
    %2016 = vset.pattern.permute.xlu0 0
    %2017 = vperm.xlu0 %2016, %v1991
    %v2018 = vpop.permute.xlu0 %2017
    %2019 = vset.pattern.permute.xlu0 0
    %2020 = vperm.xlu0 %2019, %v1993
    %v2021 = vpop.permute.xlu0 %2020
    %2022 = vset.pattern.permute.xlu0 0
    %2023 = vperm.xlu0 %2022, %v1995
    %v2024 = vpop.permute.xlu0 %2023
    %2025 = vset.pattern.permute.xlu0 0
    %2026 = vperm.xlu0 %2025, %v1997
    %v2027 = vpop.permute.xlu0 %2026
    %2028 = vset.pattern.permute.xlu0 0
    %2029 = vperm.xlu0 %2028, %v1999
    %v2030 = vpop.permute.xlu0 %2029
    %2031 = vset.pattern.permute.xlu0 0
    %2032 = vperm.xlu0 %2031, %v2001
    %v2033 = vpop.permute.xlu0 %2032
    %v2034 = vlaneseq
    %v2035 = vshrl.u32 %v2034, 7
    %v2036 = vsub.s32 %v705, %v2035
    %v2037 = vrot.slane %v2012, %v2036
    %v2038 = vlaneseq
    %v2039 = vshrl.u32 %v2038, 7
    %v2040 = vsub.s32 %v705, %v2039
    %v2041 = vrot.slane %v2015, %v2040
    %v2042 = vlaneseq
    %v2043 = vshrl.u32 %v2042, 7
    %v2044 = vsub.s32 %v705, %v2043
    %v2045 = vrot.slane %v2018, %v2044
    %v2046 = vlaneseq
    %v2047 = vshrl.u32 %v2046, 7
    %v2048 = vsub.s32 %v705, %v2047
    %v2049 = vrot.slane %v2021, %v2048
    %v2050 = vlaneseq
    %v2051 = vshrl.u32 %v2050, 7
    %v2052 = vsub.s32 %v705, %v2051
    %v2053 = vrot.slane %v2024, %v2052
    %v2054 = vlaneseq
    %v2055 = vshrl.u32 %v2054, 7
    %v2056 = vsub.s32 %v705, %v2055
    %v2057 = vrot.slane %v2027, %v2056
    %v2058 = vlaneseq
    %v2059 = vshrl.u32 %v2058, 7
    %v2060 = vsub.s32 %v705, %v2059
    %v2061 = vrot.slane %v2030, %v2060
    %v2062 = vlaneseq
    %v2063 = vshrl.u32 %v2062, 7
    %v2064 = vsub.s32 %v705, %v2063
    %v2065 = vrot.slane %v2033, %v2064
    %v2066 = vsel %vm802, %v2041, %v2037
    %v2067 = vsel %vm804, %v2045, %v2066
    %v2068 = vsel %vm1258, %v2049, %v2067
    %v2069 = vsel %vm802, %v2057, %v2053
    %v2070 = vsel %vm804, %v2061, %v2069
    %v2071 = vsel %vm1258, %v2065, %v2070
    %v2074 = vsel %vm1265, %v2068, 0.0
    %2075 = vadd.xlane.f32.xlu0 %v2074
    %v2076 = vpop.xlane.xlu0 %2075
    %v2077 = vsel %vm1265, %v2071, 0.0
    %2078 = vadd.xlane.f32.xlu0 %v2077
    %v2079 = vpop.xlane.xlu0 %2078
    %v2080 = vrcp.pop %v2076
    %v2081 = vrcp.pop %v2079
    %v2084 = vlaneseq
    %v2085 = vshrl.u32 %v2084, 7
    %v2086 = vsub.s32 0, %v2085
    %v2087 = vrot.slane %v2080, %v2086
    %v2088 = vlaneseq
    %v2089 = vshrl.u32 %v2088, 7
    %v2090 = vsub.s32 1, %v2089
    %v2091 = vrot.slane %v2080, %v2090
    %v2092 = vlaneseq
    %v2093 = vshrl.u32 %v2092, 7
    %v2094 = vsub.s32 2, %v2093
    %v2095 = vrot.slane %v2080, %v2094
    %v2096 = vlaneseq
    %v2097 = vshrl.u32 %v2096, 7
    %v2098 = vsub.s32 3, %v2097
    %v2099 = vrot.slane %v2080, %v2098
    %v2100 = vlaneseq
    %v2101 = vshrl.u32 %v2100, 7
    %v2102 = vsub.s32 0, %v2101
    %v2103 = vrot.slane %v2081, %v2102
    %v2104 = vlaneseq
    %v2105 = vshrl.u32 %v2104, 7
    %v2106 = vsub.s32 1, %v2105
    %v2107 = vrot.slane %v2081, %v2106
    %v2108 = vlaneseq
    %v2109 = vshrl.u32 %v2108, 7
    %v2110 = vsub.s32 2, %v2109
    %v2111 = vrot.slane %v2081, %v2110
    %v2112 = vlaneseq
    %v2113 = vshrl.u32 %v2112, 7
    %v2114 = vsub.s32 3, %v2113
    %v2115 = vrot.slane %v2081, %v2114
    %v2124 = vmul.f32 %v1987, %v2087
    %v2125 = vmul.f32 %v1989, %v2091
    %v2126 = vmul.f32 %v1991, %v2095
    %v2127 = vmul.f32 %v1993, %v2099
    %v2128 = vmul.f32 %v1995, %v2103
    %v2129 = vmul.f32 %v1997, %v2107
    %v2130 = vmul.f32 %v1999, %v2111
    %v2131 = vmul.f32 %v2001, %v2115
    %2133 = vset.pattern.permute.xlu0 0
    %2134 = vperm.xlu0 %2133, %v2124
    %v2135 = vpop.permute.xlu0 %2134
    %2138 = vset.pattern.permute.xlu0 0
    %2139 = vperm.xlu0 %2138, %v2125
    %v2140 = vpop.permute.xlu0 %2139
    %2143 = vset.pattern.permute.xlu0 0
    %2144 = vperm.xlu0 %2143, %v2126
    %v2145 = vpop.permute.xlu0 %2144
    %2148 = vset.pattern.permute.xlu0 0
    %2149 = vperm.xlu0 %2148, %v2127
    %v2150 = vpop.permute.xlu0 %2149
    %2153 = vset.pattern.permute.xlu0 0
    %2154 = vperm.xlu0 %2153, %v2128
    %v2155 = vpop.permute.xlu0 %2154
    %2158 = vset.pattern.permute.xlu0 0
    %2159 = vperm.xlu0 %2158, %v2129
    %v2160 = vpop.permute.xlu0 %2159
    %2163 = vset.pattern.permute.xlu0 0
    %2164 = vperm.xlu0 %2163, %v2130
    %v2165 = vpop.permute.xlu0 %2164
    %2168 = vset.pattern.permute.xlu0 0
    %2169 = vperm.xlu0 %2168, %v2131
    %v2170 = vpop.permute.xlu0 %2169
    %v2172 = vmul.f32 %v2135, %v805
    %v2173 = vmul.f32 %v2140, %v807
    %v2174 = vmul.f32 %v2145, %v809
    %v2175 = vmul.f32 %v2150, %v811
    %v2176 = vmul.f32 %v2155, %v813
    %v2177 = vmul.f32 %v2160, %v815
    %v2178 = vmul.f32 %v2165, %v817
    %v2179 = vmul.f32 %v2170, %v819
    %v2180 = vsel %vm828, %v2172, 0.0
    %v2181 = vsel %vm828, %v2173, 0.0
    %v2182 = vadd.f32 %v2180, %v2181
    %v2183 = vsel %vm828, %v2174, 0.0
    %v2184 = vadd.f32 %v2182, %v2183
    %v2185 = vsel %vm828, %v2175, 0.0
    %v2186 = vadd.f32 %v2184, %v2185
    %v2187 = vsel %vm828, %v2176, 0.0
    %v2188 = vsel %vm828, %v2177, 0.0
    %v2189 = vadd.f32 %v2187, %v2188
    %v2190 = vsel %vm828, %v2178, 0.0
    %v2191 = vadd.f32 %v2189, %v2190
    %v2192 = vsel %vm828, %v2179, 0.0
    %v2193 = vadd.f32 %v2191, %v2192
    %v2194 = vmul.f32 %v2186, %v2186
    %v2195 = vmul.f32 %v2193, %v2193
    %v2196 = vsel %vm828, %v2194, 0.0
    %2197 = vadd.xlane.f32.xlu0 %v2196
    %v2198 = vpop.xlane.xlu0 %2197
    %v2199 = vsel %vm828, %v2195, 0.0
    %2200 = vadd.xlane.f32.xlu0 %v2199
    %v2201 = vpop.xlane.xlu0 %2200
    %v2202 = vrsqrt.pop %v2198
    %v2203 = vmul.f32 %v2198, %v2202
    %vm2204 = vcmp.eq.f32.partialorder %v2198, inf
    %v2205 = vsel %vm2204, %v2198, %v2203
    %vm2206 = vcmp.eq.f32.partialorder %v2198, 0.0
    %v2207 = vand.u32 %v2198, 2147483648
    %v2208 = vsel %vm2206, %v2207, %v2205
    %v2209 = vrsqrt.pop %v2201
    %v2210 = vmul.f32 %v2201, %v2209
    %vm2211 = vcmp.eq.f32.partialorder %v2201, inf
    %v2212 = vsel %vm2211, %v2201, %v2210
    %vm2213 = vcmp.eq.f32.partialorder %v2201, 0.0
    %v2214 = vand.u32 %v2201, 2147483648
    %v2215 = vsel %vm2213, %v2214, %v2212
    %v2216 = vmul.f32 %v2186, %v2208
    %v2217 = vmul.f32 %v2193, %v2215
    %v2218 = vadd.f32 %v2198, 0.5
    %v2219 = vadd.f32 %v2201, 0.5
    %v2220 = vrcp.pop %v2218
    %v2221 = vrcp.pop %v2219
    %v2222 = vmul.f32 %v2216, %v2220
    %v2223 = vmul.f32 %v2217, %v2221
    %v2224 = vlaneseq
    %v2225 = vshrl.u32 %v2224, 7
    %v2226 = vsub.s32 %v705, %v2225
    %v2227 = vrot.slane %v2135, %v2226
    %v2228 = vlaneseq
    %v2229 = vshrl.u32 %v2228, 7
    %v2230 = vsub.s32 %v705, %v2229
    %v2231 = vrot.slane %v2140, %v2230
    %v2232 = vlaneseq
    %v2233 = vshrl.u32 %v2232, 7
    %v2234 = vsub.s32 %v705, %v2233
    %v2235 = vrot.slane %v2145, %v2234
    %v2236 = vlaneseq
    %v2237 = vshrl.u32 %v2236, 7
    %v2238 = vsub.s32 %v705, %v2237
    %v2239 = vrot.slane %v2150, %v2238
    %v2240 = vlaneseq
    %v2241 = vshrl.u32 %v2240, 7
    %v2242 = vsub.s32 %v705, %v2241
    %v2243 = vrot.slane %v2155, %v2242
    %v2244 = vlaneseq
    %v2245 = vshrl.u32 %v2244, 7
    %v2246 = vsub.s32 %v705, %v2245
    %v2247 = vrot.slane %v2160, %v2246
    %v2248 = vlaneseq
    %v2249 = vshrl.u32 %v2248, 7
    %v2250 = vsub.s32 %v705, %v2249
    %v2251 = vrot.slane %v2165, %v2250
    %v2252 = vlaneseq
    %v2253 = vshrl.u32 %v2252, 7
    %v2254 = vsub.s32 %v705, %v2253
    %v2255 = vrot.slane %v2170, %v2254
    %v2256 = vsel %vm802, %v2231, %v2227
    %v2257 = vsel %vm804, %v2235, %v2256
    %v2258 = vsel %vm1258, %v2239, %v2257
    %v2259 = vsel %vm802, %v2247, %v2243
    %v2260 = vsel %vm804, %v2251, %v2259
    %v2261 = vsel %vm1258, %v2255, %v2260
    %2264 = vst.msk [vmem:[%s7] sm:$0xf] %vm1265, %v2258
    %2265 = vst.msk [vmem:[%s7 + $0x4] sm:$0xf] %vm1265, %v2261
    %v2266 = vmul.f32 %v2222, %v2222
    %v2267 = vmul.f32 %v2223, %v2223
    %v2268 = vsel %vm828, %v2266, 0.0
    %2269 = vadd.xlane.f32.xlu0 %v2268
    %v2270 = vpop.xlane.xlu0 %2269
    %v2271 = vsel %vm828, %v2267, 0.0
    %2272 = vadd.xlane.f32.xlu0 %v2271
    %v2273 = vpop.xlane.xlu0 %2272
    %v2274 = vrsqrt.pop %v2270
    %v2275 = vmul.f32 %v2270, %v2274
    %vm2276 = vcmp.eq.f32.partialorder %v2270, inf
    %v2277 = vsel %vm2276, %v2270, %v2275
    %vm2278 = vcmp.eq.f32.partialorder %v2270, 0.0
    %v2279 = vand.u32 %v2270, 2147483648
    %v2280 = vsel %vm2278, %v2279, %v2277
    %v2281 = vrsqrt.pop %v2273
    %v2282 = vmul.f32 %v2273, %v2281
    %vm2283 = vcmp.eq.f32.partialorder %v2273, inf
    %v2284 = vsel %vm2283, %v2273, %v2282
    %vm2285 = vcmp.eq.f32.partialorder %v2273, 0.0
    %v2286 = vand.u32 %v2273, 2147483648
    %v2287 = vsel %vm2285, %v2286, %v2284
    %v2290 = vlaneseq
    %v2291 = vshrl.u32 %v2290, 7
    %v2292 = vsub.s32 %v705, %v2291
    %v2293 = vrot.slane %v2280, %v2292
    %v2294 = vlaneseq
    %v2295 = vshrl.u32 %v2294, 7
    %v2296 = vsub.s32 %v705, %v2295
    %v2297 = vrot.slane %v2287, %v2296
    %v2298 = vsel %vm802, %v2297, %v2293
    %vm2300 = vcmask 17408
    %2301 = vst.msk [vmem:[#allocation6] sm:$0x3] %vm2300, %v2298
    // Predicated region
    $region22: #{capsule_forward.1} parent=1 // pred_check
      _
    $region23: #{capsule_forward.1} parent=1 // pred_check_branch
      %2303 = sbr.rel (0) target = $region25
    $region24: #{capsule_forward.1} parent=1 // pred_region
      %s2305 = ssub.s32 128, 128
      %2306 = vsyncadd [#allocation4], %s2305
      %s2307 = sshll.u32 [#allocation5], 4
      %s2308 = int_to_ptr.vmem [resolvable:$true] %s2307
      %2313 = dma.vmem_to_hbm [thread:$0]  %s2308, 128, %s4, [#allocation4], 64, 64, 4
    $region25: #{capsule_forward.1} parent=1 // pred_fallthru
      _
    // Predicated region
    $region26: #{capsule_forward.1} parent=1 // pred_check
      _
    $region27: #{capsule_forward.1} parent=1 // pred_check_branch
      %2315 = sbr.rel (0) target = $region29
    $region28: #{capsule_forward.1} parent=1 // pred_region
      %s2317 = ssub.s32 32, 32
      %2318 = vsyncadd [#allocation7], %s2317
      %s2320 = sshll.u32 [#allocation6], 4
      %s2321 = int_to_ptr.vmem [resolvable:$true] %s2320
      %2323 = dma.vmem_to_hbm [thread:$0]  %s2321, 32, %s5, [#allocation7]
    $region29: #{capsule_forward.1} parent=1 // pred_fallthru
      _
    // Predicated region
    $region30: #{capsule_forward.1} parent=1 // pred_check
      _
    $region31: #{capsule_forward.1} parent=1 // pred_check_branch
      %2325 = sbr.rel (0) target = $region33
    $region32: #{capsule_forward.1} parent=1 // pred_region
      _
    $region33: #{capsule_forward.1} parent=1 // pred_fallthru
      _
    // Predicated region
    $region34: #{capsule_forward.1} parent=1 // pred_check
      _
    $region35: #{capsule_forward.1} parent=1 // pred_check_branch
      %2327 = sbr.rel (0) target = $region37
    $region36: #{capsule_forward.1} parent=1 // pred_region
      _
    $region37: #{capsule_forward.1} parent=1 // pred_fallthru
      _
    // Predicated region
    $region38: #{capsule_forward.1} parent=1 // pred_check
      _
    $region39: #{capsule_forward.1} parent=1 // pred_check_branch
      %2329 = sbr.rel (0) target = $region41
    $region40: #{capsule_forward.1} parent=1 // pred_region
      %2330 = dma.done [#allocation4], 128
    $region41: #{capsule_forward.1} parent=1 // pred_fallthru
      _
    // Predicated region
    $region42: #{capsule_forward.1} parent=1 // pred_check
      _
    $region43: #{capsule_forward.1} parent=1 // pred_check_branch
      %2332 = sbr.rel (0) target = $region45
    $region44: #{capsule_forward.1} parent=1 // pred_region
      %2333 = dma.done [#allocation7], 32
    $region45: #{capsule_forward.1} parent=1 // pred_fallthru
      _
    // Predicated region
    $region46: #{capsule_forward.1} parent=1 // pred_check
      _
    $region47: #{capsule_forward.1} parent=1 // pred_check_branch
      %2335 = sbr.rel (0) target = $region49
    $region48: #{capsule_forward.1} parent=1 // pred_region
      _
    $region49: #{capsule_forward.1} parent=1 // pred_fallthru
      _
    // Predicated region
    $region50: #{capsule_forward.1} parent=1 // pred_check
      _
    $region51: #{capsule_forward.1} parent=1 // pred_check_branch
      %2337 = sbr.rel (0) target = $region53
    $region52: #{capsule_forward.1} parent=1 // pred_region
      _
    $region53: #{capsule_forward.1} parent=1 // pred_fallthru
      _
    %2338 = vsyncpa [#allocation3], 1
    %2339 = vsyncpa [#allocation4], 1
    %2340 = vsyncpa [#allocation7], 1

</llo_original>
